<compile_context>
chip_gen: v6e
topology: v6e:2x2x1
jax: 0.10.0
libtpu: 0.0.40
codegen_flags: <defaults>
</compile_context>

<pallas_src>
import math
from functools import partial

import jax
import jax.numpy as jnp
from jax import lax
from jax.experimental import pallas as pl
from jax.experimental.pallas import tpu as pltpu


def _layer_norm(x, gamma, eps=1e-5):
    """F.layer_norm over the last dim, weight=gamma, bias=None (bias=False)."""
    mean = jnp.mean(x, axis=-1, keepdims=True)
    xc = x - mean
    var = jnp.mean(xc * xc, axis=-1, keepdims=True)
    return xc * lax.rsqrt(var + eps) * gamma


def _gelu(x):
    # TODO(synk): nn.GELU() defaults to the exact erf form; erf lowering is not
    # guaranteed on the Mosaic backend, so use the tanh approximation (<=~3e-4
    # abs deviation), which also runs on the otherwise-idle EUP slot.
    c = math.sqrt(2.0 / math.pi)
    return 0.5 * x * (1.0 + jnp.tanh(c * (x + 0.044715 * x * x * x)))


def _encoder_layer_kernel(batch, n_head, mxu_dtype,
                          x_ref, wq_ref, wk_ref, wv_ref, wo_ref,
                          g1_ref, g2_ref, wfc_ref, wproj_ref, o_ref):
    """Full pre-LN encoder layer; one invocation covers the whole (B*S, D) batch.

    MXU operands are cast to `mxu_dtype` (bf16 in the perf config) with f32
    accumulation; LayerNorm / softmax / GELU / residual math stays f32.
    """
    f32 = jnp.float32
    approx = jnp.dtype(mxu_dtype) != jnp.dtype(jnp.float32)   # static (trace-time)

    x = x_ref[...]                          # (B*S, D) f32, whole batch in one step
    BS, D = x.shape
    B, H = batch, n_head
    S = BS // B
    hd = D // H
    scale = 1.0 / math.sqrt(hd)

    g1 = g1_ref[...]                        # (1, D) f32 -> broadcasts over rows
    g2 = g2_ref[...]

    # ---------------- sublayer 1: x + SelfAttention(LN1(x)) ----------------
    h = _layer_norm(x, g1)                  # f32 elementwise
    h_m = h.astype(mxu_dtype)
    # Fold 1/sqrt(hd) into q once (one (B*S, D) multiply instead of per-head S*S).
    q = jnp.dot(h_m, wq_ref[...], preferred_element_type=f32) * scale
    k = jnp.dot(h_m, wk_ref[...], preferred_element_type=f32)
    v = jnp.dot(h_m, wv_ref[...], preferred_element_type=f32)

    # Regroup (B*S, H*hd) rows into head-major (B*H, S, hd) operands using static
    # slices + stack (robust relayout ops), so scores and p@v each lower to ONE
    # batched MXU dot_general instead of H tiny per-head matmuls.
    # TODO(synk): at realistic S/D run this per head-group inside a
    # lax.fori_loop(unroll=True) to bound vreg/VMEM live ranges.
    def split_heads(t):
        t = t.astype(mxu_dtype)
        blocks = []
        for b in range(B):
            rows = t[b * S:(b + 1) * S, :]                       # sublane slice
            for hh in range(H):
                blocks.append(rows[:, hh * hd:(hh + 1) * hd])    # lane slice
        return jnp.stack(blocks, axis=0)                         # (B*H, S, hd)

    qh, kh, vh = split_heads(q), split_heads(k), split_heads(v)

    # scores[g, i, j] = sum_d q[g,i,d] * k[g,j,d]   (G = B*H batched matmul)
    s = lax.dot_general(qh, kh, (((2,), (2,)), ((0,), (0,))),
                        preferred_element_type=f32)              # (G, S, S) f32
    s = s - jnp.max(s, axis=-1, keepdims=True)                   # stable softmax
    p = jnp.exp(s)
    denom = jnp.sum(p, axis=-1, keepdims=True)
    if approx:
        p = p * pl.reciprocal(denom, approx=True)                # EUP, frees VALU
    else:
        p = p / denom                                            # exact (validation)

    ctx = lax.dot_general(p.astype(mxu_dtype), vh,
                          (((2,), (1,)), ((0,), (0,))),
                          preferred_element_type=f32)            # (G, S, hd) f32

    # Merge heads back into (B*S, D) rows and do ONE dense output projection (K=D).
    ctx_rows = jnp.concatenate(
        [jnp.concatenate([ctx[b * H + hh] for hh in range(H)], axis=-1)
         for b in range(B)], axis=0)                             # (B*S, D) f32
    attn = jnp.dot(ctx_rows.astype(mxu_dtype), wo_ref[...],
                   preferred_element_type=f32)
    x1 = x + attn                                                # residual 1 (f32)

    # ---------------- sublayer 2: x1 + MLP(LN2(x1)) -------------------------
    # TODO(synk): at realistic S/D, chunk the 4*D axis with a fori_loop
    # (fc -> GELU -> proj per chunk into an f32 accumulator) and tile S as a
    # "parallel" grid axis so the (S, 4D) intermediate never lives fully in VMEM
    # (mandatory on v7x's 64 MiB).
    h2 = _layer_norm(x1, g2)
    ff = jnp.dot(h2.astype(mxu_dtype), wfc_ref[...], preferred_element_type=f32)
    ff = _gelu(ff)                          # keep f32 (v5e VPU/EUP has no bf16 path)
    y = jnp.dot(ff.astype(mxu_dtype), wproj_ref[...], preferred_element_type=f32)

    o_ref[...] = (x1 + y).astype(o_ref.dtype)                    # residual 2


def transformer_encoder_layer_forward(x, params, n_head, *, mxu_dtype=jnp.bfloat16):
    """Forward of TransformerEncoderLayer (pre-LN, dropout=0, bias=False).

    x: [B, S, D] float32.  params use PyTorch Linear layout (out_features, in_features):
      wq/wk/wv (in_proj slices), wo (out_proj): [D, D]; g1/g2: [D];
      wfc (c_fc): [4D, D]; wproj (c_proj): [D, 4D].
    """
    B, S, D = x.shape
    F = 4 * D

    # Host-side glue (free): (in, out) weight layout so the kernel issues plain
    # row-major MXU matmuls; mxu_dtype (bf16) weights halve HBM traffic and VMEM
    # residency; lift LayerNorm gains to (1, D); flatten activations to (B*S, D).
    wq_t = params["wq"].T.astype(mxu_dtype)
    wk_t = params["wk"].T.astype(mxu_dtype)
    wv_t = params["wv"].T.astype(mxu_dtype)
    wo_t = params["wo"].T.astype(mxu_dtype)
    wfc_t = params["wfc"].T.astype(mxu_dtype)       # (D, 4D)
    wproj_t = params["wproj"].T.astype(mxu_dtype)   # (4D, D)
    g1 = params["g1"].reshape(1, D).astype(jnp.float32)
    g2 = params["g2"].reshape(1, D).astype(jnp.float32)
    x2 = x.reshape(B * S, D)

    def _origin(i):                     # single grid step -> every block at (0, 0)
        return (0, 0)

    def _resident(shape):
        # Constant-index weights: nothing to prefetch across grid steps, so skip
        # double-buffering (at real d_model this is what keeps resident weights
        # inside v7x's 64 MiB physical VMEM).
        try:
            return pl.BlockSpec(shape, _origin, pipeline_mode=pl.Buffered(1))
        except TypeError:               # older jax without pipeline_mode support
            return pl.BlockSpec(shape, _origin)

    kernel = partial(_encoder_layer_kernel, B, n_head, mxu_dtype)

    out = pl.pallas_call(
        kernel,
        out_shape=jax.ShapeDtypeStruct((B * S, D), x.dtype),
        grid_spec=pltpu.PrefetchScalarGridSpec(
            num_scalar_prefetch=0,
            # Whole batch in ONE grid step: per-step overhead (~0.35us / ~600 cyc)
            # dwarfs the toy compute, and one big block gives denser vregs.
            # TODO(synk): for realistic shapes add a "parallel" S-tile grid axis
            # (>=2 balanced steps so both v7x TensorCores get work) and keep D a
            # multiple of 128 so the output store stays lane-dense (unmasked vst).
            grid=(1,),
            in_specs=[
                pl.BlockSpec((B * S, D), _origin),   # x (activations)
                _resident((D, D)),                   # wq_t
                _resident((D, D)),                   # wk_t
                _resident((D, D)),                   # wv_t
                _resident((D, D)),                   # wo_t
                pl.BlockSpec((1, D), _origin),       # gamma1
                pl.BlockSpec((1, D), _origin),       # gamma2
                _resident((D, F)),                   # wfc_t
                _resident((F, D)),                   # wproj_t
            ],
            out_specs=pl.BlockSpec((B * S, D), _origin),
        ),
        compiler_params=pltpu.CompilerParams(
            dimension_semantics=("arbitrary",),      # 1 step; S-axis would be "parallel"
            vmem_limit_bytes=32 * 1024 * 1024,       # explicit scoped-VMEM budget
        ),
    )(x2, wq_t, wk_t, wv_t, wo_t, g1, g2, wfc_t, wproj_t)

    return out.reshape(B, S, D)


def reference_forward(x, params, n_head):
    """Pure-JAX f32 reference (HIGHEST matmul precision) mirroring the PyTorch module."""
    B, S, D = x.shape
    hd = D // n_head
    hp = lax.Precision.HIGHEST

    h = _layer_norm(x, params["g1"])
    q = jnp.einsum("bsd,ed->bse", h, params["wq"], precision=hp).reshape(B, S, n_head, hd)
    k = jnp.einsum("bsd,ed->bse", h, params["wk"], precision=hp).reshape(B, S, n_head, hd)
    v = jnp.einsum("bsd,ed->bse", h, params["wv"], precision=hp).reshape(B, S, n_head, hd)
    s = jnp.einsum("bqhd,bkhd->bhqk", q, k, precision=hp) / math.sqrt(hd)
    p = jax.nn.softmax(s, axis=-1)
    ctx = jnp.einsum("bhqk,bkhd->bqhd", p, v, precision=hp).reshape(B, S, D)
    attn = jnp.einsum("bsd,ed->bse", ctx, params["wo"], precision=hp)
    x1 = x + attn

    h2 = _layer_norm(x1, params["g2"])
    ff = jnp.einsum("bsd,fd->bsf", h2, params["wfc"], precision=hp)
    ff = _gelu(ff)
    ff = jnp.einsum("bsf,df->bsd", ff, params["wproj"], precision=hp)
    return x1 + ff


if __name__ == "__main__":
    B, S, D, H = 2, 8, 32, 4   # batch, seq, d_model, n_head  (head_dim = 8)

    key = jax.random.PRNGKey(0)
    ks = jax.random.split(key, 9)
    x = jax.random.normal(ks[0], (B, S, D), dtype=jnp.float32)

    params = {
        "wq": 0.2 * jax.random.normal(ks[1], (D, D), dtype=jnp.float32),
        "wk": 0.2 * jax.random.normal(ks[2], (D, D), dtype=jnp.float32),
        "wv": 0.2 * jax.random.normal(ks[3], (D, D), dtype=jnp.float32),
        "wo": 0.2 * jax.random.normal(ks[4], (D, D), dtype=jnp.float32),
        "g1": 1.0 + 0.1 * jax.random.normal(ks[5], (D,), dtype=jnp.float32),
        "g2": 1.0 + 0.1 * jax.random.normal(ks[6], (D,), dtype=jnp.float32),
        "wfc": 0.1 * jax.random.normal(ks[7], (4 * D, D), dtype=jnp.float32),
        "wproj": 0.1 * jax.random.normal(ks[8], (D, 4 * D), dtype=jnp.float32),
    }

    ref = reference_forward(x, params, H)

    # 1) Structural validation: f32 MXU operands, exact softmax divide, tight tolerance.
    out_f32 = jax.block_until_ready(
        transformer_encoder_layer_forward(x, params, H, mxu_dtype=jnp.float32))
    assert out_f32.shape == (B, S, D)
    err_f32 = float(jnp.max(jnp.abs(out_f32 - ref)))
    assert jnp.allclose(out_f32, ref, atol=2e-3, rtol=2e-3), err_f32

    # 2) Performance configuration: bf16 MXU operands + approximate reciprocal.
    #    Tolerance covers bf16 rounding across the matmul chain (f32 accumulation).
    out_bf16 = jax.block_until_ready(
        transformer_encoder_layer_forward(x, params, H, mxu_dtype=jnp.bfloat16))
    assert out_bf16.shape == (B, S, D)
    err_bf16 = float(jnp.max(jnp.abs(out_bf16 - ref)))
    assert jnp.allclose(out_bf16, ref, atol=5e-2, rtol=5e-2), err_bf16

    print("KERNEL_OK")
</pallas_src>

<mosaic_0001>
module attributes {stable_mosaic.version = 11 : i64} {
  func.func @_encoder_layer_kernel(%arg0: i32, %arg1: memref<16x32xf32, #tpu.memory_space<vmem>>, %arg2: memref<32x32xf32, #tpu.memory_space<vmem>>, %arg3: memref<32x32xf32, #tpu.memory_space<vmem>>, %arg4: memref<32x32xf32, #tpu.memory_space<vmem>>, %arg5: memref<32x32xf32, #tpu.memory_space<vmem>>, %arg6: memref<1x32xf32, #tpu.memory_space<vmem>>, %arg7: memref<1x32xf32, #tpu.memory_space<vmem>>, %arg8: memref<32x128xf32, #tpu.memory_space<vmem>>, %arg9: memref<128x32xf32, #tpu.memory_space<vmem>>, %arg10: memref<16x32xf32, #tpu.memory_space<vmem>>) attributes {dimension_semantics = [#tpu.dimension_semantics<arbitrary>], iteration_bounds = array<i64: 1>, scalar_prefetch = 0 : i64, scratch_operands = 0 : i64, tpu.core_type = #tpu.core_type<tc>, window_params = [{pipeline_mode = #tpu.pipeline_mode<synchronous>, transform_indices = @transform_0, window_bounds = array<i64: 16, 32>}, {pipeline_mode = #tpu.pipeline_mode<synchronous>, transform_indices = @transform_1, window_bounds = array<i64: 32, 32>}, {pipeline_mode = #tpu.pipeline_mode<synchronous>, transform_indices = @transform_2, window_bounds = array<i64: 32, 32>}, {pipeline_mode = #tpu.pipeline_mode<synchronous>, transform_indices = @transform_3, window_bounds = array<i64: 32, 32>}, {pipeline_mode = #tpu.pipeline_mode<synchronous>, transform_indices = @transform_4, window_bounds = array<i64: 32, 32>}, {pipeline_mode = #tpu.pipeline_mode<synchronous>, transform_indices = @transform_5, window_bounds = array<i64: 1, 32>}, {pipeline_mode = #tpu.pipeline_mode<synchronous>, transform_indices = @transform_6, window_bounds = array<i64: 1, 32>}, {pipeline_mode = #tpu.pipeline_mode<synchronous>, transform_indices = @transform_7, window_bounds = array<i64: 32, 128>}, {pipeline_mode = #tpu.pipeline_mode<synchronous>, transform_indices = @transform_8, window_bounds = array<i64: 128, 32>}, {pipeline_mode = #tpu.pipeline_mode<synchronous>, transform_indices = @transform_9, window_bounds = array<i64: 16, 32>}]} {
    %c0 = arith.constant 0 : index
    %c0_0 = arith.constant 0 : index
    %0 = vector.load %arg1[%c0, %c0_0] : memref<16x32xf32, #tpu.memory_space<vmem>>, vector<16x32xf32>
    %c0_1 = arith.constant 0 : index
    %c0_2 = arith.constant 0 : index
    %1 = vector.load %arg6[%c0_1, %c0_2] : memref<1x32xf32, #tpu.memory_space<vmem>>, vector<1x32xf32>
    %c0_3 = arith.constant 0 : index
    %c0_4 = arith.constant 0 : index
    %2 = vector.load %arg7[%c0_3, %c0_4] : memref<1x32xf32, #tpu.memory_space<vmem>>, vector<1x32xf32>
    %cst = arith.constant dense<0.000000e+00> : vector<16xf32>
    %3 = vector.multi_reduction <add>, %0, %cst [1] : vector<16x32xf32> to vector<16xf32>
    %4 = vector.shape_cast %3 : vector<16xf32> to vector<16x1xf32>
    %cst_5 = arith.constant 3.200000e+01 : f32
    %5 = vector.broadcast %cst_5 : f32 to vector<16x1xf32>
    %6 = arith.divf %4, %5 : vector<16x1xf32>
    %7 = vector.broadcast %6 : vector<16x1xf32> to vector<16x32xf32>
    %8 = arith.subf %0, %7 : vector<16x32xf32>
    %9 = arith.mulf %8, %8 : vector<16x32xf32>
    %cst_6 = arith.constant dense<0.000000e+00> : vector<16xf32>
    %10 = vector.multi_reduction <add>, %9, %cst_6 [1] : vector<16x32xf32> to vector<16xf32>
    %11 = vector.shape_cast %10 : vector<16xf32> to vector<16x1xf32>
    %cst_7 = arith.constant 3.200000e+01 : f32
    %12 = vector.broadcast %cst_7 : f32 to vector<16x1xf32>
    %13 = arith.divf %11, %12 : vector<16x1xf32>
    %cst_8 = arith.constant 9.99999974E-6 : f32
    %14 = vector.broadcast %cst_8 : f32 to vector<16x1xf32>
    %15 = arith.addf %13, %14 : vector<16x1xf32>
    %16 = math.rsqrt %15 : vector<16x1xf32>
    %17 = vector.broadcast %16 : vector<16x1xf32> to vector<16x32xf32>
    %18 = arith.mulf %8, %17 : vector<16x32xf32>
    %19 = vector.broadcast %1 : vector<1x32xf32> to vector<16x32xf32>
    %20 = arith.mulf %18, %19 : vector<16x32xf32>
    %c0_9 = arith.constant 0 : index
    %c0_10 = arith.constant 0 : index
    %21 = vector.load %arg2[%c0_9, %c0_10] : memref<32x32xf32, #tpu.memory_space<vmem>>, vector<32x32xf32>
    %cst_11 = arith.constant dense<0.000000e+00> : vector<16x32xf32>
    %22 = tpu.matmul %20, %21, %cst_11 {dimension_numbers = #tpu.dot_dimension_numbers<[1], [0], [0], [1], [0, 0, 1, 1], [], []>} : vector<16x32xf32>, vector<32x32xf32>, vector<16x32xf32> -> vector<16x32xf32>
    %cst_12 = arith.constant 0.353553385 : f32
    %23 = vector.broadcast %cst_12 : f32 to vector<16x32xf32>
    %24 = arith.mulf %22, %23 : vector<16x32xf32>
    %c0_13 = arith.constant 0 : index
    %c0_14 = arith.constant 0 : index
    %25 = vector.load %arg3[%c0_13, %c0_14] : memref<32x32xf32, #tpu.memory_space<vmem>>, vector<32x32xf32>
    %cst_15 = arith.constant dense<0.000000e+00> : vector<16x32xf32>
    %26 = tpu.matmul %20, %25, %cst_15 {dimension_numbers = #tpu.dot_dimension_numbers<[1], [0], [0], [1], [0, 0, 1, 1], [], []>} : vector<16x32xf32>, vector<32x32xf32>, vector<16x32xf32> -> vector<16x32xf32>
    %c0_16 = arith.constant 0 : index
    %c0_17 = arith.constant 0 : index
    %27 = vector.load %arg4[%c0_16, %c0_17] : memref<32x32xf32, #tpu.memory_space<vmem>>, vector<32x32xf32>
    %cst_18 = arith.constant dense<0.000000e+00> : vector<16x32xf32>
    %28 = tpu.matmul %20, %27, %cst_18 {dimension_numbers = #tpu.dot_dimension_numbers<[1], [0], [0], [1], [0, 0, 1, 1], [], []>} : vector<16x32xf32>, vector<32x32xf32>, vector<16x32xf32> -> vector<16x32xf32>
    %29 = vector.extract_strided_slice %24 {offsets = [0, 0], sizes = [8, 32], strides = [1, 1]} : vector<16x32xf32> to vector<8x32xf32>
    %30 = vector.extract_strided_slice %29 {offsets = [0, 0], sizes = [8, 8], strides = [1, 1]} : vector<8x32xf32> to vector<8x8xf32>
    %31 = vector.extract_strided_slice %29 {offsets = [0, 8], sizes = [8, 8], strides = [1, 1]} : vector<8x32xf32> to vector<8x8xf32>
    %32 = vector.extract_strided_slice %29 {offsets = [0, 16], sizes = [8, 8], strides = [1, 1]} : vector<8x32xf32> to vector<8x8xf32>
    %33 = vector.extract_strided_slice %29 {offsets = [0, 24], sizes = [8, 8], strides = [1, 1]} : vector<8x32xf32> to vector<8x8xf32>
    %34 = vector.extract_strided_slice %24 {offsets = [8, 0], sizes = [8, 32], strides = [1, 1]} : vector<16x32xf32> to vector<8x32xf32>
    %35 = vector.extract_strided_slice %34 {offsets = [0, 0], sizes = [8, 8], strides = [1, 1]} : vector<8x32xf32> to vector<8x8xf32>
    %36 = vector.extract_strided_slice %34 {offsets = [0, 8], sizes = [8, 8], strides = [1, 1]} : vector<8x32xf32> to vector<8x8xf32>
    %37 = vector.extract_strided_slice %34 {offsets = [0, 16], sizes = [8, 8], strides = [1, 1]} : vector<8x32xf32> to vector<8x8xf32>
    %38 = vector.extract_strided_slice %34 {offsets = [0, 24], sizes = [8, 8], strides = [1, 1]} : vector<8x32xf32> to vector<8x8xf32>
    %39 = vector.shape_cast %30 : vector<8x8xf32> to vector<1x8x8xf32>
    %40 = vector.shape_cast %31 : vector<8x8xf32> to vector<1x8x8xf32>
    %41 = vector.shape_cast %32 : vector<8x8xf32> to vector<1x8x8xf32>
    %42 = vector.shape_cast %33 : vector<8x8xf32> to vector<1x8x8xf32>
    %43 = vector.shape_cast %35 : vector<8x8xf32> to vector<1x8x8xf32>
    %44 = vector.shape_cast %36 : vector<8x8xf32> to vector<1x8x8xf32>
    %45 = vector.shape_cast %37 : vector<8x8xf32> to vector<1x8x8xf32>
    %46 = vector.shape_cast %38 : vector<8x8xf32> to vector<1x8x8xf32>
    %47 = tpu.concatenate %39, %40, %41, %42, %43, %44, %45, %46 in 0 : vector<1x8x8xf32>, vector<1x8x8xf32>, vector<1x8x8xf32>, vector<1x8x8xf32>, vector<1x8x8xf32>, vector<1x8x8xf32>, vector<1x8x8xf32>, vector<1x8x8xf32> -> vector<8x8x8xf32>
    %48 = vector.extract_strided_slice %26 {offsets = [0, 0], sizes = [8, 32], strides = [1, 1]} : vector<16x32xf32> to vector<8x32xf32>
    %49 = vector.extract_strided_slice %48 {offsets = [0, 0], sizes = [8, 8], strides = [1, 1]} : vector<8x32xf32> to vector<8x8xf32>
    %50 = vector.extract_strided_slice %48 {offsets = [0, 8], sizes = [8, 8], strides = [1, 1]} : vector<8x32xf32> to vector<8x8xf32>
    %51 = vector.extract_strided_slice %48 {offsets = [0, 16], sizes = [8, 8], strides = [1, 1]} : vector<8x32xf32> to vector<8x8xf32>
    %52 = vector.extract_strided_slice %48 {offsets = [0, 24], sizes = [8, 8], strides = [1, 1]} : vector<8x32xf32> to vector<8x8xf32>
    %53 = vector.extract_strided_slice %26 {offsets = [8, 0], sizes = [8, 32], strides = [1, 1]} : vector<16x32xf32> to vector<8x32xf32>
    %54 = vector.extract_strided_slice %53 {offsets = [0, 0], sizes = [8, 8], strides = [1, 1]} : vector<8x32xf32> to vector<8x8xf32>
    %55 = vector.extract_strided_slice %53 {offsets = [0, 8], sizes = [8, 8], strides = [1, 1]} : vector<8x32xf32> to vector<8x8xf32>
    %56 = vector.extract_strided_slice %53 {offsets = [0, 16], sizes = [8, 8], strides = [1, 1]} : vector<8x32xf32> to vector<8x8xf32>
    %57 = vector.extract_strided_slice %53 {offsets = [0, 24], sizes = [8, 8], strides = [1, 1]} : vector<8x32xf32> to vector<8x8xf32>
    %58 = vector.shape_cast %49 : vector<8x8xf32> to vector<1x8x8xf32>
    %59 = vector.shape_cast %50 : vector<8x8xf32> to vector<1x8x8xf32>
    %60 = vector.shape_cast %51 : vector<8x8xf32> to vector<1x8x8xf32>
    %61 = vector.shape_cast %52 : vector<8x8xf32> to vector<1x8x8xf32>
    %62 = vector.shape_cast %54 : vector<8x8xf32> to vector<1x8x8xf32>
    %63 = vector.shape_cast %55 : vector<8x8xf32> to vector<1x8x8xf32>
    %64 = vector.shape_cast %56 : vector<8x8xf32> to vector<1x8x8xf32>
    %65 = vector.shape_cast %57 : vector<8x8xf32> to vector<1x8x8xf32>
    %66 = tpu.concatenate %58, %59, %60, %61, %62, %63, %64, %65 in 0 : vector<1x8x8xf32>, vector<1x8x8xf32>, vector<1x8x8xf32>, vector<1x8x8xf32>, vector<1x8x8xf32>, vector<1x8x8xf32>, vector<1x8x8xf32>, vector<1x8x8xf32> -> vector<8x8x8xf32>
    %67 = vector.extract_strided_slice %28 {offsets = [0, 0], sizes = [8, 32], strides = [1, 1]} : vector<16x32xf32> to vector<8x32xf32>
    %68 = vector.extract_strided_slice %67 {offsets = [0, 0], sizes = [8, 8], strides = [1, 1]} : vector<8x32xf32> to vector<8x8xf32>
    %69 = vector.extract_strided_slice %67 {offsets = [0, 8], sizes = [8, 8], strides = [1, 1]} : vector<8x32xf32> to vector<8x8xf32>
    %70 = vector.extract_strided_slice %67 {offsets = [0, 16], sizes = [8, 8], strides = [1, 1]} : vector<8x32xf32> to vector<8x8xf32>
    %71 = vector.extract_strided_slice %67 {offsets = [0, 24], sizes = [8, 8], strides = [1, 1]} : vector<8x32xf32> to vector<8x8xf32>
    %72 = vector.extract_strided_slice %28 {offsets = [8, 0], sizes = [8, 32], strides = [1, 1]} : vector<16x32xf32> to vector<8x32xf32>
    %73 = vector.extract_strided_slice %72 {offsets = [0, 0], sizes = [8, 8], strides = [1, 1]} : vector<8x32xf32> to vector<8x8xf32>
    %74 = vector.extract_strided_slice %72 {offsets = [0, 8], sizes = [8, 8], strides = [1, 1]} : vector<8x32xf32> to vector<8x8xf32>
    %75 = vector.extract_strided_slice %72 {offsets = [0, 16], sizes = [8, 8], strides = [1, 1]} : vector<8x32xf32> to vector<8x8xf32>
    %76 = vector.extract_strided_slice %72 {offsets = [0, 24], sizes = [8, 8], strides = [1, 1]} : vector<8x32xf32> to vector<8x8xf32>
    %77 = vector.shape_cast %68 : vector<8x8xf32> to vector<1x8x8xf32>
    %78 = vector.shape_cast %69 : vector<8x8xf32> to vector<1x8x8xf32>
    %79 = vector.shape_cast %70 : vector<8x8xf32> to vector<1x8x8xf32>
    %80 = vector.shape_cast %71 : vector<8x8xf32> to vector<1x8x8xf32>
    %81 = vector.shape_cast %73 : vector<8x8xf32> to vector<1x8x8xf32>
    %82 = vector.shape_cast %74 : vector<8x8xf32> to vector<1x8x8xf32>
    %83 = vector.shape_cast %75 : vector<8x8xf32> to vector<1x8x8xf32>
    %84 = vector.shape_cast %76 : vector<8x8xf32> to vector<1x8x8xf32>
    %85 = tpu.concatenate %77, %78, %79, %80, %81, %82, %83, %84 in 0 : vector<1x8x8xf32>, vector<1x8x8xf32>, vector<1x8x8xf32>, vector<1x8x8xf32>, vector<1x8x8xf32>, vector<1x8x8xf32>, vector<1x8x8xf32>, vector<1x8x8xf32> -> vector<8x8x8xf32>
    %cst_19 = arith.constant dense<0.000000e+00> : vector<8x8x8xf32>
    %86 = tpu.matmul %47, %66, %cst_19 {dimension_numbers = #tpu.dot_dimension_numbers<[2], [2], [1], [1], [0, 0, 0, 1, 1, 1], [0], [0]>} : vector<8x8x8xf32>, vector<8x8x8xf32>, vector<8x8x8xf32> -> vector<8x8x8xf32>
    %cst_20 = arith.constant dense<0xFF800000> : vector<8x8xf32>
    %87 = vector.multi_reduction <maximumf>, %86, %cst_20 [2] : vector<8x8x8xf32> to vector<8x8xf32>
    %88 = vector.shape_cast %87 : vector<8x8xf32> to vector<8x8x1xf32>
    %89 = vector.broadcast %88 : vector<8x8x1xf32> to vector<8x8x8xf32>
    %90 = arith.subf %86, %89 : vector<8x8x8xf32>
    %91 = math.exp %90 : vector<8x8x8xf32>
    %cst_21 = arith.constant dense<0.000000e+00> : vector<8x8xf32>
    %92 = vector.multi_reduction <add>, %91, %cst_21 [2] : vector<8x8x8xf32> to vector<8x8xf32>
    %93 = vector.shape_cast %92 : vector<8x8xf32> to vector<8x8x1xf32>
    %94 = vector.broadcast %93 : vector<8x8x1xf32> to vector<8x8x8xf32>
    %95 = arith.divf %91, %94 : vector<8x8x8xf32>
    %cst_22 = arith.constant dense<0.000000e+00> : vector<8x8x8xf32>
    %96 = tpu.matmul %95, %85, %cst_22 {dimension_numbers = #tpu.dot_dimension_numbers<[2], [1], [1], [2], [0, 0, 0, 1, 1, 2], [0], [0]>} : vector<8x8x8xf32>, vector<8x8x8xf32>, vector<8x8x8xf32> -> vector<8x8x8xf32>
    %97 = vector.extract_strided_slice %96 {offsets = [0, 0, 0], sizes = [1, 8, 8], strides = [1, 1, 1]} : vector<8x8x8xf32> to vector<1x8x8xf32>
    %98 = vector.shape_cast %97 : vector<1x8x8xf32> to vector<8x8xf32>
    %99 = vector.extract_strided_slice %96 {offsets = [1, 0, 0], sizes = [1, 8, 8], strides = [1, 1, 1]} : vector<8x8x8xf32> to vector<1x8x8xf32>
    %100 = vector.shape_cast %99 : vector<1x8x8xf32> to vector<8x8xf32>
    %101 = vector.extract_strided_slice %96 {offsets = [2, 0, 0], sizes = [1, 8, 8], strides = [1, 1, 1]} : vector<8x8x8xf32> to vector<1x8x8xf32>
    %102 = vector.shape_cast %101 : vector<1x8x8xf32> to vector<8x8xf32>
    %103 = vector.extract_strided_slice %96 {offsets = [3, 0, 0], sizes = [1, 8, 8], strides = [1, 1, 1]} : vector<8x8x8xf32> to vector<1x8x8xf32>
    %104 = vector.shape_cast %103 : vector<1x8x8xf32> to vector<8x8xf32>
    %105 = tpu.concatenate %98, %100, %102, %104 in 1 : vector<8x8xf32>, vector<8x8xf32>, vector<8x8xf32>, vector<8x8xf32> -> vector<8x32xf32>
    %106 = vector.extract_strided_slice %96 {offsets = [4, 0, 0], sizes = [1, 8, 8], strides = [1, 1, 1]} : vector<8x8x8xf32> to vector<1x8x8xf32>
    %107 = vector.shape_cast %106 : vector<1x8x8xf32> to vector<8x8xf32>
    %108 = vector.extract_strided_slice %96 {offsets = [5, 0, 0], sizes = [1, 8, 8], strides = [1, 1, 1]} : vector<8x8x8xf32> to vector<1x8x8xf32>
    %109 = vector.shape_cast %108 : vector<1x8x8xf32> to vector<8x8xf32>
    %110 = vector.extract_strided_slice %96 {offsets = [6, 0, 0], sizes = [1, 8, 8], strides = [1, 1, 1]} : vector<8x8x8xf32> to vector<1x8x8xf32>
    %111 = vector.shape_cast %110 : vector<1x8x8xf32> to vector<8x8xf32>
    %112 = vector.extract_strided_slice %96 {offsets = [7, 0, 0], sizes = [1, 8, 8], strides = [1, 1, 1]} : vector<8x8x8xf32> to vector<1x8x8xf32>
    %113 = vector.shape_cast %112 : vector<1x8x8xf32> to vector<8x8xf32>
    %114 = tpu.concatenate %107, %109, %111, %113 in 1 : vector<8x8xf32>, vector<8x8xf32>, vector<8x8xf32>, vector<8x8xf32> -> vector<8x32xf32>
    %115 = tpu.concatenate %105, %114 in 0 : vector<8x32xf32>, vector<8x32xf32> -> vector<16x32xf32>
    %c0_23 = arith.constant 0 : index
    %c0_24 = arith.constant 0 : index
    %116 = vector.load %arg5[%c0_23, %c0_24] : memref<32x32xf32, #tpu.memory_space<vmem>>, vector<32x32xf32>
    %cst_25 = arith.constant dense<0.000000e+00> : vector<16x32xf32>
    %117 = tpu.matmul %115, %116, %cst_25 {dimension_numbers = #tpu.dot_dimension_numbers<[1], [0], [0], [1], [0, 0, 1, 1], [], []>} : vector<16x32xf32>, vector<32x32xf32>, vector<16x32xf32> -> vector<16x32xf32>
    %118 = arith.addf %0, %117 : vector<16x32xf32>
    %cst_26 = arith.constant dense<0.000000e+00> : vector<16xf32>
    %119 = vector.multi_reduction <add>, %118, %cst_26 [1] : vector<16x32xf32> to vector<16xf32>
    %120 = vector.shape_cast %119 : vector<16xf32> to vector<16x1xf32>
    %cst_27 = arith.constant 3.200000e+01 : f32
    %121 = vector.broadcast %cst_27 : f32 to vector<16x1xf32>
    %122 = arith.divf %120, %121 : vector<16x1xf32>
    %123 = vector.broadcast %122 : vector<16x1xf32> to vector<16x32xf32>
    %124 = arith.subf %118, %123 : vector<16x32xf32>
    %125 = arith.mulf %124, %124 : vector<16x32xf32>
    %cst_28 = arith.constant dense<0.000000e+00> : vector<16xf32>
    %126 = vector.multi_reduction <add>, %125, %cst_28 [1] : vector<16x32xf32> to vector<16xf32>
    %127 = vector.shape_cast %126 : vector<16xf32> to vector<16x1xf32>
    %cst_29 = arith.constant 3.200000e+01 : f32
    %128 = vector.broadcast %cst_29 : f32 to vector<16x1xf32>
    %129 = arith.divf %127, %128 : vector<16x1xf32>
    %cst_30 = arith.constant 9.99999974E-6 : f32
    %130 = vector.broadcast %cst_30 : f32 to vector<16x1xf32>
    %131 = arith.addf %129, %130 : vector<16x1xf32>
    %132 = math.rsqrt %131 : vector<16x1xf32>
    %133 = vector.broadcast %132 : vector<16x1xf32> to vector<16x32xf32>
    %134 = arith.mulf %124, %133 : vector<16x32xf32>
    %135 = vector.broadcast %2 : vector<1x32xf32> to vector<16x32xf32>
    %136 = arith.mulf %134, %135 : vector<16x32xf32>
    %c0_31 = arith.constant 0 : index
    %c0_32 = arith.constant 0 : index
    %137 = vector.load %arg8[%c0_31, %c0_32] : memref<32x128xf32, #tpu.memory_space<vmem>>, vector<32x128xf32>
    %cst_33 = arith.constant dense<0.000000e+00> : vector<16x128xf32>
    %138 = tpu.matmul %136, %137, %cst_33 {dimension_numbers = #tpu.dot_dimension_numbers<[1], [0], [0], [1], [0, 0, 1, 1], [], []>} : vector<16x32xf32>, vector<32x128xf32>, vector<16x128xf32> -> vector<16x128xf32>
    %cst_34 = arith.constant 5.000000e-01 : f32
    %139 = vector.broadcast %cst_34 : f32 to vector<16x128xf32>
    %140 = arith.mulf %139, %138 : vector<16x128xf32>
    %cst_35 = arith.constant 4.471500e-02 : f32
    %141 = vector.broadcast %cst_35 : f32 to vector<16x128xf32>
    %142 = arith.mulf %141, %138 : vector<16x128xf32>
    %143 = arith.mulf %142, %138 : vector<16x128xf32>
    %144 = arith.mulf %143, %138 : vector<16x128xf32>
    %145 = arith.addf %138, %144 : vector<16x128xf32>
    %cst_36 = arith.constant 0.797884583 : f32
    %146 = vector.broadcast %cst_36 : f32 to vector<16x128xf32>
    %147 = arith.mulf %146, %145 : vector<16x128xf32>
    %148 = math.tanh %147 : vector<16x128xf32>
    %cst_37 = arith.constant 1.000000e+00 : f32
    %149 = vector.broadcast %cst_37 : f32 to vector<16x128xf32>
    %150 = arith.addf %149, %148 : vector<16x128xf32>
    %151 = arith.mulf %140, %150 : vector<16x128xf32>
    %c0_38 = arith.constant 0 : index
    %c0_39 = arith.constant 0 : index
    %152 = vector.load %arg9[%c0_38, %c0_39] : memref<128x32xf32, #tpu.memory_space<vmem>>, vector<128x32xf32>
    %cst_40 = arith.constant dense<0.000000e+00> : vector<16x32xf32>
    %153 = tpu.matmul %151, %152, %cst_40 {dimension_numbers = #tpu.dot_dimension_numbers<[1], [0], [0], [1], [0, 0, 1, 1], [], []>} : vector<16x128xf32>, vector<128x32xf32>, vector<16x32xf32> -> vector<16x32xf32>
    %154 = arith.addf %118, %153 : vector<16x32xf32>
    %c0_41 = arith.constant 0 : index
    %c0_42 = arith.constant 0 : index
    %155 = vector.load %arg10[%c0_41, %c0_42] : memref<16x32xf32, #tpu.memory_space<vmem>>, vector<16x32xf32>
    tpu.vector_store %arg10[%c0_41, %c0_42], %154 {strides = array<i32>} : memref<16x32xf32, #tpu.memory_space<vmem>>, vector<16x32xf32>,
    return
  }
  func.func @transform_0(%arg0: i32) -> (i32, i32) {
    %c0_i32 = arith.constant 0 : i32
    %c0_i32_0 = arith.constant 0 : i32
    %c0_i32_1 = arith.constant 0 : i32
    return %c0_i32, %c0_i32_0 : i32, i32
  }
  func.func @transform_1(%arg0: i32) -> (i32, i32) {
    %c0_i32 = arith.constant 0 : i32
    %c0_i32_0 = arith.constant 0 : i32
    %c0_i32_1 = arith.constant 0 : i32
    return %c0_i32, %c0_i32_0 : i32, i32
  }
  func.func @transform_2(%arg0: i32) -> (i32, i32) {
    %c0_i32 = arith.constant 0 : i32
    %c0_i32_0 = arith.constant 0 : i32
    %c0_i32_1 = arith.constant 0 : i32
    return %c0_i32, %c0_i32_0 : i32, i32
  }
  func.func @transform_3(%arg0: i32) -> (i32, i32) {
    %c0_i32 = arith.constant 0 : i32
    %c0_i32_0 = arith.constant 0 : i32
    %c0_i32_1 = arith.constant 0 : i32
    return %c0_i32, %c0_i32_0 : i32, i32
  }
  func.func @transform_4(%arg0: i32) -> (i32, i32) {
    %c0_i32 = arith.constant 0 : i32
    %c0_i32_0 = arith.constant 0 : i32
    %c0_i32_1 = arith.constant 0 : i32
    return %c0_i32, %c0_i32_0 : i32, i32
  }
  func.func @transform_5(%arg0: i32) -> (i32, i32) {
    %c0_i32 = arith.constant 0 : i32
    %c0_i32_0 = arith.constant 0 : i32
    %c0_i32_1 = arith.constant 0 : i32
    return %c0_i32, %c0_i32_0 : i32, i32
  }
  func.func @transform_6(%arg0: i32) -> (i32, i32) {
    %c0_i32 = arith.constant 0 : i32
    %c0_i32_0 = arith.constant 0 : i32
    %c0_i32_1 = arith.constant 0 : i32
    return %c0_i32, %c0_i32_0 : i32, i32
  }
  func.func @transform_7(%arg0: i32) -> (i32, i32) {
    %c0_i32 = arith.constant 0 : i32
    %c0_i32_0 = arith.constant 0 : i32
    %c0_i32_1 = arith.constant 0 : i32
    return %c0_i32, %c0_i32_0 : i32, i32
  }
  func.func @transform_8(%arg0: i32) -> (i32, i32) {
    %c0_i32 = arith.constant 0 : i32
    %c0_i32_0 = arith.constant 0 : i32
    %c0_i32_1 = arith.constant 0 : i32
    return %c0_i32, %c0_i32_0 : i32, i32
  }
  func.func @transform_9(%arg0: i32) -> (i32, i32) {
    %c0_i32 = arith.constant 0 : i32
    %c0_i32_0 = arith.constant 0 : i32
    %c0_i32_1 = arith.constant 0 : i32
    return %c0_i32, %c0_i32_0 : i32, i32
  }
}

</mosaic_0001>

<llo_original>
// kernel: tpu_custom_call.1
$region0: #{tpu_custom_call.1}
  #allocation0 [shape = 'u32[]', space=smem, size = 0x4, offset = 0x4, fixed_abs, tag = 'smem constant byte address 0x4 - core index']
  #allocation1 [shape = 'u32[144,128]{1,0:T(1,128)}', space=vmem, size = 0x12000, scoped, tag = 'internal scratch']
  %s0 = inlined_call_operand.hbm [shape: f32[16,32], index: 0, kind: input, shape index: {}]
  %s1 = inlined_call_operand.vmem [shape: f32[32,32], index: 1, kind: input, shape index: {}]
  %s2 = inlined_call_operand.vmem [shape: f32[32,32], index: 2, kind: input, shape index: {}]
  %s3 = inlined_call_operand.vmem [shape: f32[32,32], index: 3, kind: input, shape index: {}]
  %s4 = inlined_call_operand.vmem [shape: f32[32,32], index: 4, kind: input, shape index: {}]
  %s5 = inlined_call_operand.vmem [shape: f32[1,32], index: 5, kind: input, shape index: {}]
  %s6 = inlined_call_operand.vmem [shape: f32[1,32], index: 6, kind: input, shape index: {}]
  %s7 = inlined_call_operand.vmem [shape: f32[32,128], index: 7, kind: input, shape index: {}]
  %s8 = inlined_call_operand.vmem [shape: f32[128,32], index: 8, kind: input, shape index: {}]
  %s9 = inlined_call_operand.hbm [shape: f32[16,32], index: 9, kind: output, shape index: {}]
  %s10 = sld [smem:[#allocation0]]
  $region50: #{tpu_custom_call.1} parent=0
    _
  %s12 = ssub.s32 1, %s10
  %s13 = scalar_select 0, %s12, %s10
  $region1: #{tpu_custom_call.1} parent=0
    #allocation2 [shape = 'u8[8192]{0}', space=vmem, size = 0x2000, scoped, tag = 'input window, operand 0, single buffered']
    #allocation3 [shape = 's32[1]{0}', space=sflag, size = 0x4, scoped, tag = 'scoped memory for tpu_custom_call.1']
    #allocation4 [shape = 's32[1]{0}', space=sflag, size = 0x4, scoped, tag = 'scoped memory for tpu_custom_call.1']
    #allocation5 [shape = 'u8[8192]{0}', space=vmem, size = 0x2000, scoped, tag = 'output window, operand 0, single buffered']
    %14 = vsyncpa [#allocation3], 0
    %15 = vsyncpa [#allocation4], 0
    // Predicated region
    $region2: #{tpu_custom_call.1} parent=1 // pred_check
      _
    $region3: #{tpu_custom_call.1} parent=1 // pred_check_branch
      %17 = sbr.rel (0) target = $region5
    $region4: #{tpu_custom_call.1} parent=1 // pred_region
      %s19 = ssub.s32 256, 256
      %20 = vsyncadd [#allocation3], %s19
      %s21 = sshll.u32 [#allocation2], 4
      %s22 = int_to_ptr.vmem [resolvable:$true] %s21
      %27 = dma.hbm_to_vmem [thread:$0]  %s0, 256, %s22, [#allocation3], 128, 128, 8
    $region5: #{tpu_custom_call.1} parent=1 // pred_fallthru
      _
    // Predicated region
    $region6: #{tpu_custom_call.1} parent=1 // pred_check
      _
    $region7: #{tpu_custom_call.1} parent=1 // pred_check_branch
      %29 = sbr.rel (0) target = $region9
    $region8: #{tpu_custom_call.1} parent=1 // pred_region
      _
    $region9: #{tpu_custom_call.1} parent=1 // pred_fallthru
      _
    // Predicated region
    $region10: #{tpu_custom_call.1} parent=1 // pred_check
      _
    $region11: #{tpu_custom_call.1} parent=1 // pred_check_branch
      %31 = sbr.rel (0) target = $region13
    $region12: #{tpu_custom_call.1} parent=1 // pred_region
      _
    $region13: #{tpu_custom_call.1} parent=1 // pred_fallthru
      _
    // Predicated region
    $region14: #{tpu_custom_call.1} parent=1 // pred_check
      _
    $region15: #{tpu_custom_call.1} parent=1 // pred_check_branch
      %33 = sbr.rel (0) target = $region17
    $region16: #{tpu_custom_call.1} parent=1 // pred_region
      _
    $region17: #{tpu_custom_call.1} parent=1 // pred_fallthru
      _
    // Predicated region
    $region18: #{tpu_custom_call.1} parent=1 // pred_check
      _
    $region19: #{tpu_custom_call.1} parent=1 // pred_check_branch
      %35 = sbr.rel (0) target = $region21
    $region20: #{tpu_custom_call.1} parent=1 // pred_region
      _
    $region21: #{tpu_custom_call.1} parent=1 // pred_fallthru
      _
    // Predicated region
    $region22: #{tpu_custom_call.1} parent=1 // pred_check
      _
    $region23: #{tpu_custom_call.1} parent=1 // pred_check_branch
      %37 = sbr.rel (0) target = $region25
    $region24: #{tpu_custom_call.1} parent=1 // pred_region
      _
    $region25: #{tpu_custom_call.1} parent=1 // pred_fallthru
      _
    // Predicated region
    $region26: #{tpu_custom_call.1} parent=1 // pred_check
      _
    $region27: #{tpu_custom_call.1} parent=1 // pred_check_branch
      %39 = sbr.rel (0) target = $region29
    $region28: #{tpu_custom_call.1} parent=1 // pred_region
      _
    $region29: #{tpu_custom_call.1} parent=1 // pred_fallthru
      _
    // Predicated region
    $region30: #{tpu_custom_call.1} parent=1 // pred_check
      _
    $region31: #{tpu_custom_call.1} parent=1 // pred_check_branch
      %41 = sbr.rel (0) target = $region33
    $region32: #{tpu_custom_call.1} parent=1 // pred_region
      _
    $region33: #{tpu_custom_call.1} parent=1 // pred_fallthru
      _
    // Predicated region
    $region34: #{tpu_custom_call.1} parent=1 // pred_check
      _
    $region35: #{tpu_custom_call.1} parent=1 // pred_check_branch
      %43 = sbr.rel (0) target = $region37
    $region36: #{tpu_custom_call.1} parent=1 // pred_region
      _
    $region37: #{tpu_custom_call.1} parent=1 // pred_fallthru
      _
    // Predicated region
    $region38: #{tpu_custom_call.1} parent=1 // pred_check
      _
    $region39: #{tpu_custom_call.1} parent=1 // pred_check_branch
      %45 = sbr.rel (0) target = $region41
    $region40: #{tpu_custom_call.1} parent=1 // pred_region
      %46 = dma.done [#allocation3], 256
    $region41: #{tpu_custom_call.1} parent=1 // pred_fallthru
      _
    %v47 = vld [vmem:[#allocation2] sm:$0xff]
    %v48 = vld [vmem:[#allocation2 + $0x8] sm:$0xff]
    %v49 = vld [vmem:[%s5] sm:$0x1]
    %v50 = vld [vmem:[%s6] sm:$0x1]
    %vm51 = vcmask 261120
    %v52 = vsel %vm51, %v47, 0.0
    %53 = vadd.xlane.f32.xlu0 %v52
    %v54 = vpop.xlane.xlu0 %53
    %v55 = vsel %vm51, %v48, 0.0
    %56 = vadd.xlane.f32.xlu0 %v55
    %v57 = vpop.xlane.xlu0 %56
    %v58 = vrcp.pop 32.0
    %v59 = vmul.f32 %v54, %v58
    %v60 = vmul.f32 %v57, %v58
    %v61 = vsub.f32 %v47, %v59
    %v62 = vsub.f32 %v48, %v60
    %v63 = vmul.f32 %v61, %v61
    %v64 = vmul.f32 %v62, %v62
    %v65 = vsel %vm51, %v63, 0.0
    %66 = vadd.xlane.f32.xlu0 %v65
    %v67 = vpop.xlane.xlu0 %66
    %v68 = vsel %vm51, %v64, 0.0
    %69 = vadd.xlane.f32.xlu0 %v68
    %v70 = vpop.xlane.xlu0 %69
    %v71 = vmul.f32 %v67, %v58
    %v72 = vmul.f32 %v70, %v58
    %v73 = vadd.f32 %v71, 1e-05
    %v74 = vadd.f32 %v72, 1e-05
    %v75 = vrsqrt.pop %v73
    %v76 = vrsqrt.pop %v74
    %v77 = vmul.f32 %v61, %v75
    %v78 = vmul.f32 %v62, %v76
    %v80 = vlaneseq
    %v81 = vshrl.u32 %v80, 7
    %v82 = vsub.s32 0, %v81
    %v83 = vrot.slane %v49, %v82
    %v85 = vmul.f32 %v77, %v83
    %v86 = vmul.f32 %v78, %v83
    %v87 = vld [vmem:[%s1] sm:$0xff]
    %v88 = vld [vmem:[%s1 + $0x8] sm:$0xff]
    %v89 = vld [vmem:[%s1 + $0x10] sm:$0xff]
    %v90 = vld [vmem:[%s1 + $0x18] sm:$0xff]
    %v92 = vsel %vm51, %v85, 0
    %v95 = vsel %vm51, %v86, 0
    %97 = vmatprep.subr.mxu0 0.0
    %98 = vmatpush1.msra.mxu0 0.0
    %99 = vmatprep.subr.mxu0 0.0
    %100 = vmatpush1.msra.mxu0 0.0
    %101 = vmatprep.subr.mxu0 0.0
    %102 = vmatpush1.msra.mxu0 0.0
    %103 = vmatprep.subr.mxu0 0.0
    %104 = vmatpush1.msra.mxu0 0.0
    %105 = vmatprep.subr.mxu0 0.0
    %106 = vmatpush1.msra.mxu0 0.0
    %107 = vmatprep.subr.mxu0 0.0
    %108 = vmatpush1.msra.mxu0 0.0
    %109 = vmatprep.subr.mxu0 0.0
    %110 = vmatpush1.msra.mxu0 0.0
    %111 = vmatprep.subr.mxu0 0.0
    %112 = vmatpush1.msra.mxu0 0.0
    %113 = vmatprep.subr.mxu0 0.0
    %114 = vmatpush1.msra.mxu0 0.0
    %115 = vmatprep.subr.mxu0 0.0
    %116 = vmatpush1.msra.mxu0 0.0
    %117 = vmatprep.subr.mxu0 0.0
    %118 = vmatpush1.msra.mxu0 0.0
    %119 = vmatprep.subr.mxu0 0.0
    %120 = vmatpush1.msra.mxu0 0.0
    %121 = vmatprep.subr.mxu0 0.0
    %122 = vmatpush1.msra.mxu0 %v90
    %123 = vmatprep.subr.mxu0 0.0
    %124 = vmatpush1.msra.mxu0 %v89
    %125 = vmatprep.subr.mxu0 0.0
    %126 = vmatpush1.msra.mxu0 %v88
    %127 = vmatprep.subr.mxu0 0.0
    %128 = vmatpush1.msra.mxu0 %v87
    %129 = vmatprep.subr.mxu0 0.0
    %130 = vmatpush2.msra.mxu0 0.0
    %131 = vmatprep.subr.mxu0 0.0
    %132 = vmatpush2.msra.mxu0 0.0
    %133 = vmatprep.subr.mxu0 0.0
    %134 = vmatpush2.msra.mxu0 0.0
    %135 = vmatprep.subr.mxu0 0.0
    %136 = vmatpush2.msra.mxu0 0.0
    %137 = vmatprep.subr.mxu0 0.0
    %138 = vmatpush2.msra.mxu0 0.0
    %139 = vmatprep.subr.mxu0 0.0
    %140 = vmatpush2.msra.mxu0 0.0
    %141 = vmatprep.subr.mxu0 0.0
    %142 = vmatpush2.msra.mxu0 0.0
    %143 = vmatprep.subr.mxu0 0.0
    %144 = vmatpush2.msra.mxu0 0.0
    %145 = vmatprep.subr.mxu0 0.0
    %146 = vmatpush2.msra.mxu0 0.0
    %147 = vmatprep.subr.mxu0 0.0
    %148 = vmatpush2.msra.mxu0 0.0
    %149 = vmatprep.subr.mxu0 0.0
    %150 = vmatpush2.msra.mxu0 0.0
    %151 = vmatprep.subr.mxu0 0.0
    %152 = vmatpush2.msra.mxu0 0.0
    %153 = vmatprep.subr.mxu0 0.0
    %154 = vmatpush2.msra.mxu0 0.0
    %155 = vmatprep.subr.mxu0 0.0
    %156 = vmatpush2.msra.mxu0 0.0
    %157 = vmatprep.subr.mxu0 0.0
    %158 = vmatpush2.msra.mxu0 0.0
    %159 = vmatprep.subr.mxu0 0.0
    %160 = vmatpush2.msra.mxu0 0.0
    %161 = vmatprep.mubr.f32.mxu0 0.0
    %162 = vmatmul.mubr.f32.gmra.mxu0 %v92
    %v163 = vpop.f32.mrf.mxu0
    %v164 = vadd.f32 0.0, %v163
    %v165 = vpop.f32.mrf.mxu0
    %166 = vmatprep.mubr.f32.mxu0 0.0
    %167 = vmatmul.mubr.f32.gmra.mxu0 %v95
    %v168 = vpop.f32.mrf.mxu0
    %v169 = vadd.f32 0.0, %v168
    %v170 = vpop.f32.mrf.mxu0
    %171 = vdwg.mxu0
    %v172 = vmul.f32 %v164, 0.35355338
    %v173 = vmul.f32 %v169, 0.35355338
    %v174 = vld [vmem:[%s2] sm:$0xff]
    %v175 = vld [vmem:[%s2 + $0x8] sm:$0xff]
    %v176 = vld [vmem:[%s2 + $0x10] sm:$0xff]
    %v177 = vld [vmem:[%s2 + $0x18] sm:$0xff]
    %178 = vmatprep.subr.mxu0 0.0
    %179 = vmatpush1.msra.mxu0 0.0
    %180 = vmatprep.subr.mxu0 0.0
    %181 = vmatpush1.msra.mxu0 0.0
    %182 = vmatprep.subr.mxu0 0.0
    %183 = vmatpush1.msra.mxu0 0.0
    %184 = vmatprep.subr.mxu0 0.0
    %185 = vmatpush1.msra.mxu0 0.0
    %186 = vmatprep.subr.mxu0 0.0
    %187 = vmatpush1.msra.mxu0 0.0
    %188 = vmatprep.subr.mxu0 0.0
    %189 = vmatpush1.msra.mxu0 0.0
    %190 = vmatprep.subr.mxu0 0.0
    %191 = vmatpush1.msra.mxu0 0.0
    %192 = vmatprep.subr.mxu0 0.0
    %193 = vmatpush1.msra.mxu0 0.0
    %194 = vmatprep.subr.mxu0 0.0
    %195 = vmatpush1.msra.mxu0 0.0
    %196 = vmatprep.subr.mxu0 0.0
    %197 = vmatpush1.msra.mxu0 0.0
    %198 = vmatprep.subr.mxu0 0.0
    %199 = vmatpush1.msra.mxu0 0.0
    %200 = vmatprep.subr.mxu0 0.0
    %201 = vmatpush1.msra.mxu0 0.0
    %202 = vmatprep.subr.mxu0 0.0
    %203 = vmatpush1.msra.mxu0 %v177
    %204 = vmatprep.subr.mxu0 0.0
    %205 = vmatpush1.msra.mxu0 %v176
    %206 = vmatprep.subr.mxu0 0.0
    %207 = vmatpush1.msra.mxu0 %v175
    %208 = vmatprep.subr.mxu0 0.0
    %209 = vmatpush1.msra.mxu0 %v174
    %210 = vmatprep.subr.mxu0 0.0
    %211 = vmatpush2.msra.mxu0 0.0
    %212 = vmatprep.subr.mxu0 0.0
    %213 = vmatpush2.msra.mxu0 0.0
    %214 = vmatprep.subr.mxu0 0.0
    %215 = vmatpush2.msra.mxu0 0.0
    %216 = vmatprep.subr.mxu0 0.0
    %217 = vmatpush2.msra.mxu0 0.0
    %218 = vmatprep.subr.mxu0 0.0
    %219 = vmatpush2.msra.mxu0 0.0
    %220 = vmatprep.subr.mxu0 0.0
    %221 = vmatpush2.msra.mxu0 0.0
    %222 = vmatprep.subr.mxu0 0.0
    %223 = vmatpush2.msra.mxu0 0.0
    %224 = vmatprep.subr.mxu0 0.0
    %225 = vmatpush2.msra.mxu0 0.0
    %226 = vmatprep.subr.mxu0 0.0
    %227 = vmatpush2.msra.mxu0 0.0
    %228 = vmatprep.subr.mxu0 0.0
    %229 = vmatpush2.msra.mxu0 0.0
    %230 = vmatprep.subr.mxu0 0.0
    %231 = vmatpush2.msra.mxu0 0.0
    %232 = vmatprep.subr.mxu0 0.0
    %233 = vmatpush2.msra.mxu0 0.0
    %234 = vmatprep.subr.mxu0 0.0
    %235 = vmatpush2.msra.mxu0 0.0
    %236 = vmatprep.subr.mxu0 0.0
    %237 = vmatpush2.msra.mxu0 0.0
    %238 = vmatprep.subr.mxu0 0.0
    %239 = vmatpush2.msra.mxu0 0.0
    %240 = vmatprep.subr.mxu0 0.0
    %241 = vmatpush2.msra.mxu0 0.0
    %242 = vmatprep.mubr.f32.mxu0 0.0
    %243 = vmatmul.mubr.f32.gmra.mxu0 %v92
    %v244 = vpop.f32.mrf.mxu0
    %v245 = vadd.f32 0.0, %v244
    %v246 = vpop.f32.mrf.mxu0
    %247 = vmatprep.mubr.f32.mxu0 0.0
    %248 = vmatmul.mubr.f32.gmra.mxu0 %v95
    %v249 = vpop.f32.mrf.mxu0
    %v250 = vadd.f32 0.0, %v249
    %v251 = vpop.f32.mrf.mxu0
    %252 = vdwg.mxu0
    %v253 = vld [vmem:[%s3] sm:$0xff]
    %v254 = vld [vmem:[%s3 + $0x8] sm:$0xff]
    %v255 = vld [vmem:[%s3 + $0x10] sm:$0xff]
    %v256 = vld [vmem:[%s3 + $0x18] sm:$0xff]
    %257 = vmatprep.subr.mxu0 0.0
    %258 = vmatpush1.msra.mxu0 0.0
    %259 = vmatprep.subr.mxu0 0.0
    %260 = vmatpush1.msra.mxu0 0.0
    %261 = vmatprep.subr.mxu0 0.0
    %262 = vmatpush1.msra.mxu0 0.0
    %263 = vmatprep.subr.mxu0 0.0
    %264 = vmatpush1.msra.mxu0 0.0
    %265 = vmatprep.subr.mxu0 0.0
    %266 = vmatpush1.msra.mxu0 0.0
    %267 = vmatprep.subr.mxu0 0.0
    %268 = vmatpush1.msra.mxu0 0.0
    %269 = vmatprep.subr.mxu0 0.0
    %270 = vmatpush1.msra.mxu0 0.0
    %271 = vmatprep.subr.mxu0 0.0
    %272 = vmatpush1.msra.mxu0 0.0
    %273 = vmatprep.subr.mxu0 0.0
    %274 = vmatpush1.msra.mxu0 0.0
    %275 = vmatprep.subr.mxu0 0.0
    %276 = vmatpush1.msra.mxu0 0.0
    %277 = vmatprep.subr.mxu0 0.0
    %278 = vmatpush1.msra.mxu0 0.0
    %279 = vmatprep.subr.mxu0 0.0
    %280 = vmatpush1.msra.mxu0 0.0
    %281 = vmatprep.subr.mxu0 0.0
    %282 = vmatpush1.msra.mxu0 %v256
    %283 = vmatprep.subr.mxu0 0.0
    %284 = vmatpush1.msra.mxu0 %v255
    %285 = vmatprep.subr.mxu0 0.0
    %286 = vmatpush1.msra.mxu0 %v254
    %287 = vmatprep.subr.mxu0 0.0
    %288 = vmatpush1.msra.mxu0 %v253
    %289 = vmatprep.subr.mxu0 0.0
    %290 = vmatpush2.msra.mxu0 0.0
    %291 = vmatprep.subr.mxu0 0.0
    %292 = vmatpush2.msra.mxu0 0.0
    %293 = vmatprep.subr.mxu0 0.0
    %294 = vmatpush2.msra.mxu0 0.0
    %295 = vmatprep.subr.mxu0 0.0
    %296 = vmatpush2.msra.mxu0 0.0
    %297 = vmatprep.subr.mxu0 0.0
    %298 = vmatpush2.msra.mxu0 0.0
    %299 = vmatprep.subr.mxu0 0.0
    %300 = vmatpush2.msra.mxu0 0.0
    %301 = vmatprep.subr.mxu0 0.0
    %302 = vmatpush2.msra.mxu0 0.0
    %303 = vmatprep.subr.mxu0 0.0
    %304 = vmatpush2.msra.mxu0 0.0
    %305 = vmatprep.subr.mxu0 0.0
    %306 = vmatpush2.msra.mxu0 0.0
    %307 = vmatprep.subr.mxu0 0.0
    %308 = vmatpush2.msra.mxu0 0.0
    %309 = vmatprep.subr.mxu0 0.0
    %310 = vmatpush2.msra.mxu0 0.0
    %311 = vmatprep.subr.mxu0 0.0
    %312 = vmatpush2.msra.mxu0 0.0
    %313 = vmatprep.subr.mxu0 0.0
    %314 = vmatpush2.msra.mxu0 0.0
    %315 = vmatprep.subr.mxu0 0.0
    %316 = vmatpush2.msra.mxu0 0.0
    %317 = vmatprep.subr.mxu0 0.0
    %318 = vmatpush2.msra.mxu0 0.0
    %319 = vmatprep.subr.mxu0 0.0
    %320 = vmatpush2.msra.mxu0 0.0
    %321 = vmatprep.mubr.f32.mxu0 0.0
    %322 = vmatmul.mubr.f32.gmra.mxu0 %v92
    %v323 = vpop.f32.mrf.mxu0
    %v324 = vadd.f32 0.0, %v323
    %v325 = vpop.f32.mrf.mxu0
    %326 = vmatprep.mubr.f32.mxu0 0.0
    %327 = vmatmul.mubr.f32.gmra.mxu0 %v95
    %v328 = vpop.f32.mrf.mxu0
    %v329 = vadd.f32 0.0, %v328
    %v330 = vpop.f32.mrf.mxu0
    %331 = vdwg.mxu0
    %333 = vrot.lane.b32.xlu0 %v172, 120
    %v334 = vpop.permute.xlu0 %333
    %335 = vrot.lane.b32.xlu0 %v172, 112
    %v336 = vpop.permute.xlu0 %335
    %337 = vrot.lane.b32.xlu0 %v172, 104
    %v338 = vpop.permute.xlu0 %337
    %340 = vrot.lane.b32.xlu0 %v173, 120
    %v341 = vpop.permute.xlu0 %340
    %342 = vrot.lane.b32.xlu0 %v173, 112
    %v343 = vpop.permute.xlu0 %342
    %344 = vrot.lane.b32.xlu0 %v173, 104
    %v345 = vpop.permute.xlu0 %344
    %347 = vrot.lane.b32.xlu0 %v245, 120
    %v348 = vpop.permute.xlu0 %347
    %349 = vrot.lane.b32.xlu0 %v245, 112
    %v350 = vpop.permute.xlu0 %349
    %351 = vrot.lane.b32.xlu0 %v245, 104
    %v352 = vpop.permute.xlu0 %351
    %354 = vrot.lane.b32.xlu0 %v250, 120
    %v355 = vpop.permute.xlu0 %354
    %356 = vrot.lane.b32.xlu0 %v250, 112
    %v357 = vpop.permute.xlu0 %356
    %358 = vrot.lane.b32.xlu0 %v250, 104
    %v359 = vpop.permute.xlu0 %358
    %361 = vrot.lane.b32.xlu0 %v324, 120
    %v362 = vpop.permute.xlu0 %361
    %364 = vrot.lane.b32.xlu0 %v324, 112
    %v365 = vpop.permute.xlu0 %364
    %367 = vrot.lane.b32.xlu0 %v324, 104
    %v368 = vpop.permute.xlu0 %367
    %371 = vrot.lane.b32.xlu0 %v329, 120
    %v372 = vpop.permute.xlu0 %371
    %374 = vrot.lane.b32.xlu0 %v329, 112
    %v375 = vpop.permute.xlu0 %374
    %377 = vrot.lane.b32.xlu0 %v329, 104
    %v378 = vpop.permute.xlu0 %377
    %vm380 = vcmask 64512
    %v381 = vsel %vm380, %v172, 0
    %v383 = vsel %vm380, %v245, 0
    %385 = vmatprep.subr.mxu0 0.0
    %386 = vmatpush1.xpose.msra.mxu0 0.0
    %387 = vmatprep.subr.mxu0 0.0
    %388 = vmatpush1.xpose.msra.mxu0 0.0
    %389 = vmatprep.subr.mxu0 0.0
    %390 = vmatpush1.xpose.msra.mxu0 0.0
    %391 = vmatprep.subr.mxu0 0.0
    %392 = vmatpush1.xpose.msra.mxu0 0.0
    %393 = vmatprep.subr.mxu0 0.0
    %394 = vmatpush1.xpose.msra.mxu0 0.0
    %395 = vmatprep.subr.mxu0 0.0
    %396 = vmatpush1.xpose.msra.mxu0 0.0
    %397 = vmatprep.subr.mxu0 0.0
    %398 = vmatpush1.xpose.msra.mxu0 0.0
    %399 = vmatprep.subr.mxu0 0.0
    %400 = vmatpush1.xpose.msra.mxu0 0.0
    %401 = vmatprep.subr.mxu0 0.0
    %402 = vmatpush1.xpose.msra.mxu0 0.0
    %403 = vmatprep.subr.mxu0 0.0
    %404 = vmatpush1.xpose.msra.mxu0 0.0
    %405 = vmatprep.subr.mxu0 0.0
    %406 = vmatpush1.xpose.msra.mxu0 0.0
    %407 = vmatprep.subr.mxu0 0.0
    %408 = vmatpush1.xpose.msra.mxu0 0.0
    %409 = vmatprep.subr.mxu0 0.0
    %410 = vmatpush1.xpose.msra.mxu0 0.0
    %411 = vmatprep.subr.mxu0 0.0
    %412 = vmatpush1.xpose.msra.mxu0 0.0
    %413 = vmatprep.subr.mxu0 0.0
    %414 = vmatpush1.xpose.msra.mxu0 0.0
    %415 = vmatprep.subr.mxu0 0.0
    %416 = vmatpush1.xpose.msra.mxu0 %v383
    %417 = vmatprep.subr.mxu0 0.0
    %418 = vmatpush2.xpose.msra.mxu0 0.0
    %419 = vmatprep.subr.mxu0 0.0
    %420 = vmatpush2.xpose.msra.mxu0 0.0
    %421 = vmatprep.subr.mxu0 0.0
    %422 = vmatpush2.xpose.msra.mxu0 0.0
    %423 = vmatprep.subr.mxu0 0.0
    %424 = vmatpush2.xpose.msra.mxu0 0.0
    %425 = vmatprep.subr.mxu0 0.0
    %426 = vmatpush2.xpose.msra.mxu0 0.0
    %427 = vmatprep.subr.mxu0 0.0
    %428 = vmatpush2.xpose.msra.mxu0 0.0
    %429 = vmatprep.subr.mxu0 0.0
    %430 = vmatpush2.xpose.msra.mxu0 0.0
    %431 = vmatprep.subr.mxu0 0.0
    %432 = vmatpush2.xpose.msra.mxu0 0.0
    %433 = vmatprep.subr.mxu0 0.0
    %434 = vmatpush2.xpose.msra.mxu0 0.0
    %435 = vmatprep.subr.mxu0 0.0
    %436 = vmatpush2.xpose.msra.mxu0 0.0
    %437 = vmatprep.subr.mxu0 0.0
    %438 = vmatpush2.xpose.msra.mxu0 0.0
    %439 = vmatprep.subr.mxu0 0.0
    %440 = vmatpush2.xpose.msra.mxu0 0.0
    %441 = vmatprep.subr.mxu0 0.0
    %442 = vmatpush2.xpose.msra.mxu0 0.0
    %443 = vmatprep.subr.mxu0 0.0
    %444 = vmatpush2.xpose.msra.mxu0 0.0
    %445 = vmatprep.subr.mxu0 0.0
    %446 = vmatpush2.xpose.msra.mxu0 0.0
    %447 = vmatprep.subr.mxu0 0.0
    %448 = vmatpush2.xpose.msra.mxu0 0.0
    %449 = vmatprep.mubr.f32.mxu0 0.0
    %450 = vmatmul.mubr.f32.gmra.mxu0 %v381
    %v451 = vpop.f32.mrf.mxu0
    %v452 = vadd.f32 0.0, %v451
    %v453 = vpop.f32.mrf.mxu0
    %454 = vdwg.mxu0
    %v455 = vsel %vm380, %v334, 0
    %v457 = vsel %vm380, %v348, 0
    %459 = vmatprep.subr.mxu0 0.0
    %460 = vmatpush1.xpose.msra.mxu0 0.0
    %461 = vmatprep.subr.mxu0 0.0
    %462 = vmatpush1.xpose.msra.mxu0 0.0
    %463 = vmatprep.subr.mxu0 0.0
    %464 = vmatpush1.xpose.msra.mxu0 0.0
    %465 = vmatprep.subr.mxu0 0.0
    %466 = vmatpush1.xpose.msra.mxu0 0.0
    %467 = vmatprep.subr.mxu0 0.0
    %468 = vmatpush1.xpose.msra.mxu0 0.0
    %469 = vmatprep.subr.mxu0 0.0
    %470 = vmatpush1.xpose.msra.mxu0 0.0
    %471 = vmatprep.subr.mxu0 0.0
    %472 = vmatpush1.xpose.msra.mxu0 0.0
    %473 = vmatprep.subr.mxu0 0.0
    %474 = vmatpush1.xpose.msra.mxu0 0.0
    %475 = vmatprep.subr.mxu0 0.0
    %476 = vmatpush1.xpose.msra.mxu0 0.0
    %477 = vmatprep.subr.mxu0 0.0
    %478 = vmatpush1.xpose.msra.mxu0 0.0
    %479 = vmatprep.subr.mxu0 0.0
    %480 = vmatpush1.xpose.msra.mxu0 0.0
    %481 = vmatprep.subr.mxu0 0.0
    %482 = vmatpush1.xpose.msra.mxu0 0.0
    %483 = vmatprep.subr.mxu0 0.0
    %484 = vmatpush1.xpose.msra.mxu0 0.0
    %485 = vmatprep.subr.mxu0 0.0
    %486 = vmatpush1.xpose.msra.mxu0 0.0
    %487 = vmatprep.subr.mxu0 0.0
    %488 = vmatpush1.xpose.msra.mxu0 0.0
    %489 = vmatprep.subr.mxu0 0.0
    %490 = vmatpush1.xpose.msra.mxu0 %v457
    %491 = vmatprep.subr.mxu0 0.0
    %492 = vmatpush2.xpose.msra.mxu0 0.0
    %493 = vmatprep.subr.mxu0 0.0
    %494 = vmatpush2.xpose.msra.mxu0 0.0
    %495 = vmatprep.subr.mxu0 0.0
    %496 = vmatpush2.xpose.msra.mxu0 0.0
    %497 = vmatprep.subr.mxu0 0.0
    %498 = vmatpush2.xpose.msra.mxu0 0.0
    %499 = vmatprep.subr.mxu0 0.0
    %500 = vmatpush2.xpose.msra.mxu0 0.0
    %501 = vmatprep.subr.mxu0 0.0
    %502 = vmatpush2.xpose.msra.mxu0 0.0
    %503 = vmatprep.subr.mxu0 0.0
    %504 = vmatpush2.xpose.msra.mxu0 0.0
    %505 = vmatprep.subr.mxu0 0.0
    %506 = vmatpush2.xpose.msra.mxu0 0.0
    %507 = vmatprep.subr.mxu0 0.0
    %508 = vmatpush2.xpose.msra.mxu0 0.0
    %509 = vmatprep.subr.mxu0 0.0
    %510 = vmatpush2.xpose.msra.mxu0 0.0
    %511 = vmatprep.subr.mxu0 0.0
    %512 = vmatpush2.xpose.msra.mxu0 0.0
    %513 = vmatprep.subr.mxu0 0.0
    %514 = vmatpush2.xpose.msra.mxu0 0.0
    %515 = vmatprep.subr.mxu0 0.0
    %516 = vmatpush2.xpose.msra.mxu0 0.0
    %517 = vmatprep.subr.mxu0 0.0
    %518 = vmatpush2.xpose.msra.mxu0 0.0
    %519 = vmatprep.subr.mxu0 0.0
    %520 = vmatpush2.xpose.msra.mxu0 0.0
    %521 = vmatprep.subr.mxu0 0.0
    %522 = vmatpush2.xpose.msra.mxu0 0.0
    %523 = vmatprep.mubr.f32.mxu0 0.0
    %524 = vmatmul.mubr.f32.gmra.mxu0 %v455
    %v525 = vpop.f32.mrf.mxu0
    %v526 = vadd.f32 0.0, %v525
    %v527 = vpop.f32.mrf.mxu0
    %528 = vdwg.mxu0
    %v529 = vsel %vm380, %v336, 0
    %v531 = vsel %vm380, %v350, 0
    %533 = vmatprep.subr.mxu0 0.0
    %534 = vmatpush1.xpose.msra.mxu0 0.0
    %535 = vmatprep.subr.mxu0 0.0
    %536 = vmatpush1.xpose.msra.mxu0 0.0
    %537 = vmatprep.subr.mxu0 0.0
    %538 = vmatpush1.xpose.msra.mxu0 0.0
    %539 = vmatprep.subr.mxu0 0.0
    %540 = vmatpush1.xpose.msra.mxu0 0.0
    %541 = vmatprep.subr.mxu0 0.0
    %542 = vmatpush1.xpose.msra.mxu0 0.0
    %543 = vmatprep.subr.mxu0 0.0
    %544 = vmatpush1.xpose.msra.mxu0 0.0
    %545 = vmatprep.subr.mxu0 0.0
    %546 = vmatpush1.xpose.msra.mxu0 0.0
    %547 = vmatprep.subr.mxu0 0.0
    %548 = vmatpush1.xpose.msra.mxu0 0.0
    %549 = vmatprep.subr.mxu0 0.0
    %550 = vmatpush1.xpose.msra.mxu0 0.0
    %551 = vmatprep.subr.mxu0 0.0
    %552 = vmatpush1.xpose.msra.mxu0 0.0
    %553 = vmatprep.subr.mxu0 0.0
    %554 = vmatpush1.xpose.msra.mxu0 0.0
    %555 = vmatprep.subr.mxu0 0.0
    %556 = vmatpush1.xpose.msra.mxu0 0.0
    %557 = vmatprep.subr.mxu0 0.0
    %558 = vmatpush1.xpose.msra.mxu0 0.0
    %559 = vmatprep.subr.mxu0 0.0
    %560 = vmatpush1.xpose.msra.mxu0 0.0
    %561 = vmatprep.subr.mxu0 0.0
    %562 = vmatpush1.xpose.msra.mxu0 0.0
    %563 = vmatprep.subr.mxu0 0.0
    %564 = vmatpush1.xpose.msra.mxu0 %v531
    %565 = vmatprep.subr.mxu0 0.0
    %566 = vmatpush2.xpose.msra.mxu0 0.0
    %567 = vmatprep.subr.mxu0 0.0
    %568 = vmatpush2.xpose.msra.mxu0 0.0
    %569 = vmatprep.subr.mxu0 0.0
    %570 = vmatpush2.xpose.msra.mxu0 0.0
    %571 = vmatprep.subr.mxu0 0.0
    %572 = vmatpush2.xpose.msra.mxu0 0.0
    %573 = vmatprep.subr.mxu0 0.0
    %574 = vmatpush2.xpose.msra.mxu0 0.0
    %575 = vmatprep.subr.mxu0 0.0
    %576 = vmatpush2.xpose.msra.mxu0 0.0
    %577 = vmatprep.subr.mxu0 0.0
    %578 = vmatpush2.xpose.msra.mxu0 0.0
    %579 = vmatprep.subr.mxu0 0.0
    %580 = vmatpush2.xpose.msra.mxu0 0.0
    %581 = vmatprep.subr.mxu0 0.0
    %582 = vmatpush2.xpose.msra.mxu0 0.0
    %583 = vmatprep.subr.mxu0 0.0
    %584 = vmatpush2.xpose.msra.mxu0 0.0
    %585 = vmatprep.subr.mxu0 0.0
    %586 = vmatpush2.xpose.msra.mxu0 0.0
    %587 = vmatprep.subr.mxu0 0.0
    %588 = vmatpush2.xpose.msra.mxu0 0.0
    %589 = vmatprep.subr.mxu0 0.0
    %590 = vmatpush2.xpose.msra.mxu0 0.0
    %591 = vmatprep.subr.mxu0 0.0
    %592 = vmatpush2.xpose.msra.mxu0 0.0
    %593 = vmatprep.subr.mxu0 0.0
    %594 = vmatpush2.xpose.msra.mxu0 0.0
    %595 = vmatprep.subr.mxu0 0.0
    %596 = vmatpush2.xpose.msra.mxu0 0.0
    %597 = vmatprep.mubr.f32.mxu0 0.0
    %598 = vmatmul.mubr.f32.gmra.mxu0 %v529
    %v599 = vpop.f32.mrf.mxu0
    %v600 = vadd.f32 0.0, %v599
    %v601 = vpop.f32.mrf.mxu0
    %602 = vdwg.mxu0
    %v603 = vsel %vm380, %v338, 0
    %v605 = vsel %vm380, %v352, 0
    %607 = vmatprep.subr.mxu0 0.0
    %608 = vmatpush1.xpose.msra.mxu0 0.0
    %609 = vmatprep.subr.mxu0 0.0
    %610 = vmatpush1.xpose.msra.mxu0 0.0
    %611 = vmatprep.subr.mxu0 0.0
    %612 = vmatpush1.xpose.msra.mxu0 0.0
    %613 = vmatprep.subr.mxu0 0.0
    %614 = vmatpush1.xpose.msra.mxu0 0.0
    %615 = vmatprep.subr.mxu0 0.0
    %616 = vmatpush1.xpose.msra.mxu0 0.0
    %617 = vmatprep.subr.mxu0 0.0
    %618 = vmatpush1.xpose.msra.mxu0 0.0
    %619 = vmatprep.subr.mxu0 0.0
    %620 = vmatpush1.xpose.msra.mxu0 0.0
    %621 = vmatprep.subr.mxu0 0.0
    %622 = vmatpush1.xpose.msra.mxu0 0.0
    %623 = vmatprep.subr.mxu0 0.0
    %624 = vmatpush1.xpose.msra.mxu0 0.0
    %625 = vmatprep.subr.mxu0 0.0
    %626 = vmatpush1.xpose.msra.mxu0 0.0
    %627 = vmatprep.subr.mxu0 0.0
    %628 = vmatpush1.xpose.msra.mxu0 0.0
    %629 = vmatprep.subr.mxu0 0.0
    %630 = vmatpush1.xpose.msra.mxu0 0.0
    %631 = vmatprep.subr.mxu0 0.0
    %632 = vmatpush1.xpose.msra.mxu0 0.0
    %633 = vmatprep.subr.mxu0 0.0
    %634 = vmatpush1.xpose.msra.mxu0 0.0
    %635 = vmatprep.subr.mxu0 0.0
    %636 = vmatpush1.xpose.msra.mxu0 0.0
    %637 = vmatprep.subr.mxu0 0.0
    %638 = vmatpush1.xpose.msra.mxu0 %v605
    %639 = vmatprep.subr.mxu0 0.0
    %640 = vmatpush2.xpose.msra.mxu0 0.0
    %641 = vmatprep.subr.mxu0 0.0
    %642 = vmatpush2.xpose.msra.mxu0 0.0
    %643 = vmatprep.subr.mxu0 0.0
    %644 = vmatpush2.xpose.msra.mxu0 0.0
    %645 = vmatprep.subr.mxu0 0.0
    %646 = vmatpush2.xpose.msra.mxu0 0.0
    %647 = vmatprep.subr.mxu0 0.0
    %648 = vmatpush2.xpose.msra.mxu0 0.0
    %649 = vmatprep.subr.mxu0 0.0
    %650 = vmatpush2.xpose.msra.mxu0 0.0
    %651 = vmatprep.subr.mxu0 0.0
    %652 = vmatpush2.xpose.msra.mxu0 0.0
    %653 = vmatprep.subr.mxu0 0.0
    %654 = vmatpush2.xpose.msra.mxu0 0.0
    %655 = vmatprep.subr.mxu0 0.0
    %656 = vmatpush2.xpose.msra.mxu0 0.0
    %657 = vmatprep.subr.mxu0 0.0
    %658 = vmatpush2.xpose.msra.mxu0 0.0
    %659 = vmatprep.subr.mxu0 0.0
    %660 = vmatpush2.xpose.msra.mxu0 0.0
    %661 = vmatprep.subr.mxu0 0.0
    %662 = vmatpush2.xpose.msra.mxu0 0.0
    %663 = vmatprep.subr.mxu0 0.0
    %664 = vmatpush2.xpose.msra.mxu0 0.0
    %665 = vmatprep.subr.mxu0 0.0
    %666 = vmatpush2.xpose.msra.mxu0 0.0
    %667 = vmatprep.subr.mxu0 0.0
    %668 = vmatpush2.xpose.msra.mxu0 0.0
    %669 = vmatprep.subr.mxu0 0.0
    %670 = vmatpush2.xpose.msra.mxu0 0.0
    %671 = vmatprep.mubr.f32.mxu0 0.0
    %672 = vmatmul.mubr.f32.gmra.mxu0 %v603
    %v673 = vpop.f32.mrf.mxu0
    %v674 = vadd.f32 0.0, %v673
    %v675 = vpop.f32.mrf.mxu0
    %676 = vdwg.mxu0
    %v677 = vsel %vm380, %v173, 0
    %v679 = vsel %vm380, %v250, 0
    %681 = vmatprep.subr.mxu0 0.0
    %682 = vmatpush1.xpose.msra.mxu0 0.0
    %683 = vmatprep.subr.mxu0 0.0
    %684 = vmatpush1.xpose.msra.mxu0 0.0
    %685 = vmatprep.subr.mxu0 0.0
    %686 = vmatpush1.xpose.msra.mxu0 0.0
    %687 = vmatprep.subr.mxu0 0.0
    %688 = vmatpush1.xpose.msra.mxu0 0.0
    %689 = vmatprep.subr.mxu0 0.0
    %690 = vmatpush1.xpose.msra.mxu0 0.0
    %691 = vmatprep.subr.mxu0 0.0
    %692 = vmatpush1.xpose.msra.mxu0 0.0
    %693 = vmatprep.subr.mxu0 0.0
    %694 = vmatpush1.xpose.msra.mxu0 0.0
    %695 = vmatprep.subr.mxu0 0.0
    %696 = vmatpush1.xpose.msra.mxu0 0.0
    %697 = vmatprep.subr.mxu0 0.0
    %698 = vmatpush1.xpose.msra.mxu0 0.0
    %699 = vmatprep.subr.mxu0 0.0
    %700 = vmatpush1.xpose.msra.mxu0 0.0
    %701 = vmatprep.subr.mxu0 0.0
    %702 = vmatpush1.xpose.msra.mxu0 0.0
    %703 = vmatprep.subr.mxu0 0.0
    %704 = vmatpush1.xpose.msra.mxu0 0.0
    %705 = vmatprep.subr.mxu0 0.0
    %706 = vmatpush1.xpose.msra.mxu0 0.0
    %707 = vmatprep.subr.mxu0 0.0
    %708 = vmatpush1.xpose.msra.mxu0 0.0
    %709 = vmatprep.subr.mxu0 0.0
    %710 = vmatpush1.xpose.msra.mxu0 0.0
    %711 = vmatprep.subr.mxu0 0.0
    %712 = vmatpush1.xpose.msra.mxu0 %v679
    %713 = vmatprep.subr.mxu0 0.0
    %714 = vmatpush2.xpose.msra.mxu0 0.0
    %715 = vmatprep.subr.mxu0 0.0
    %716 = vmatpush2.xpose.msra.mxu0 0.0
    %717 = vmatprep.subr.mxu0 0.0
    %718 = vmatpush2.xpose.msra.mxu0 0.0
    %719 = vmatprep.subr.mxu0 0.0
    %720 = vmatpush2.xpose.msra.mxu0 0.0
    %721 = vmatprep.subr.mxu0 0.0
    %722 = vmatpush2.xpose.msra.mxu0 0.0
    %723 = vmatprep.subr.mxu0 0.0
    %724 = vmatpush2.xpose.msra.mxu0 0.0
    %725 = vmatprep.subr.mxu0 0.0
    %726 = vmatpush2.xpose.msra.mxu0 0.0
    %727 = vmatprep.subr.mxu0 0.0
    %728 = vmatpush2.xpose.msra.mxu0 0.0
    %729 = vmatprep.subr.mxu0 0.0
    %730 = vmatpush2.xpose.msra.mxu0 0.0
    %731 = vmatprep.subr.mxu0 0.0
    %732 = vmatpush2.xpose.msra.mxu0 0.0
    %733 = vmatprep.subr.mxu0 0.0
    %734 = vmatpush2.xpose.msra.mxu0 0.0
    %735 = vmatprep.subr.mxu0 0.0
    %736 = vmatpush2.xpose.msra.mxu0 0.0
    %737 = vmatprep.subr.mxu0 0.0
    %738 = vmatpush2.xpose.msra.mxu0 0.0
    %739 = vmatprep.subr.mxu0 0.0
    %740 = vmatpush2.xpose.msra.mxu0 0.0
    %741 = vmatprep.subr.mxu0 0.0
    %742 = vmatpush2.xpose.msra.mxu0 0.0
    %743 = vmatprep.subr.mxu0 0.0
    %744 = vmatpush2.xpose.msra.mxu0 0.0
    %745 = vmatprep.mubr.f32.mxu0 0.0
    %746 = vmatmul.mubr.f32.gmra.mxu0 %v677
    %v747 = vpop.f32.mrf.mxu0
    %v748 = vadd.f32 0.0, %v747
    %v749 = vpop.f32.mrf.mxu0
    %750 = vdwg.mxu0
    %v751 = vsel %vm380, %v341, 0
    %v753 = vsel %vm380, %v355, 0
    %755 = vmatprep.subr.mxu0 0.0
    %756 = vmatpush1.xpose.msra.mxu0 0.0
    %757 = vmatprep.subr.mxu0 0.0
    %758 = vmatpush1.xpose.msra.mxu0 0.0
    %759 = vmatprep.subr.mxu0 0.0
    %760 = vmatpush1.xpose.msra.mxu0 0.0
    %761 = vmatprep.subr.mxu0 0.0
    %762 = vmatpush1.xpose.msra.mxu0 0.0
    %763 = vmatprep.subr.mxu0 0.0
    %764 = vmatpush1.xpose.msra.mxu0 0.0
    %765 = vmatprep.subr.mxu0 0.0
    %766 = vmatpush1.xpose.msra.mxu0 0.0
    %767 = vmatprep.subr.mxu0 0.0
    %768 = vmatpush1.xpose.msra.mxu0 0.0
    %769 = vmatprep.subr.mxu0 0.0
    %770 = vmatpush1.xpose.msra.mxu0 0.0
    %771 = vmatprep.subr.mxu0 0.0
    %772 = vmatpush1.xpose.msra.mxu0 0.0
    %773 = vmatprep.subr.mxu0 0.0
    %774 = vmatpush1.xpose.msra.mxu0 0.0
    %775 = vmatprep.subr.mxu0 0.0
    %776 = vmatpush1.xpose.msra.mxu0 0.0
    %777 = vmatprep.subr.mxu0 0.0
    %778 = vmatpush1.xpose.msra.mxu0 0.0
    %779 = vmatprep.subr.mxu0 0.0
    %780 = vmatpush1.xpose.msra.mxu0 0.0
    %781 = vmatprep.subr.mxu0 0.0
    %782 = vmatpush1.xpose.msra.mxu0 0.0
    %783 = vmatprep.subr.mxu0 0.0
    %784 = vmatpush1.xpose.msra.mxu0 0.0
    %785 = vmatprep.subr.mxu0 0.0
    %786 = vmatpush1.xpose.msra.mxu0 %v753
    %787 = vmatprep.subr.mxu0 0.0
    %788 = vmatpush2.xpose.msra.mxu0 0.0
    %789 = vmatprep.subr.mxu0 0.0
    %790 = vmatpush2.xpose.msra.mxu0 0.0
    %791 = vmatprep.subr.mxu0 0.0
    %792 = vmatpush2.xpose.msra.mxu0 0.0
    %793 = vmatprep.subr.mxu0 0.0
    %794 = vmatpush2.xpose.msra.mxu0 0.0
    %795 = vmatprep.subr.mxu0 0.0
    %796 = vmatpush2.xpose.msra.mxu0 0.0
    %797 = vmatprep.subr.mxu0 0.0
    %798 = vmatpush2.xpose.msra.mxu0 0.0
    %799 = vmatprep.subr.mxu0 0.0
    %800 = vmatpush2.xpose.msra.mxu0 0.0
    %801 = vmatprep.subr.mxu0 0.0
    %802 = vmatpush2.xpose.msra.mxu0 0.0
    %803 = vmatprep.subr.mxu0 0.0
    %804 = vmatpush2.xpose.msra.mxu0 0.0
    %805 = vmatprep.subr.mxu0 0.0
    %806 = vmatpush2.xpose.msra.mxu0 0.0
    %807 = vmatprep.subr.mxu0 0.0
    %808 = vmatpush2.xpose.msra.mxu0 0.0
    %809 = vmatprep.subr.mxu0 0.0
    %810 = vmatpush2.xpose.msra.mxu0 0.0
    %811 = vmatprep.subr.mxu0 0.0
    %812 = vmatpush2.xpose.msra.mxu0 0.0
    %813 = vmatprep.subr.mxu0 0.0
    %814 = vmatpush2.xpose.msra.mxu0 0.0
    %815 = vmatprep.subr.mxu0 0.0
    %816 = vmatpush2.xpose.msra.mxu0 0.0
    %817 = vmatprep.subr.mxu0 0.0
    %818 = vmatpush2.xpose.msra.mxu0 0.0
    %819 = vmatprep.mubr.f32.mxu0 0.0
    %820 = vmatmul.mubr.f32.gmra.mxu0 %v751
    %v821 = vpop.f32.mrf.mxu0
    %v822 = vadd.f32 0.0, %v821
    %v823 = vpop.f32.mrf.mxu0
    %824 = vdwg.mxu0
    %v825 = vsel %vm380, %v343, 0
    %v827 = vsel %vm380, %v357, 0
    %829 = vmatprep.subr.mxu0 0.0
    %830 = vmatpush1.xpose.msra.mxu0 0.0
    %831 = vmatprep.subr.mxu0 0.0
    %832 = vmatpush1.xpose.msra.mxu0 0.0
    %833 = vmatprep.subr.mxu0 0.0
    %834 = vmatpush1.xpose.msra.mxu0 0.0
    %835 = vmatprep.subr.mxu0 0.0
    %836 = vmatpush1.xpose.msra.mxu0 0.0
    %837 = vmatprep.subr.mxu0 0.0
    %838 = vmatpush1.xpose.msra.mxu0 0.0
    %839 = vmatprep.subr.mxu0 0.0
    %840 = vmatpush1.xpose.msra.mxu0 0.0
    %841 = vmatprep.subr.mxu0 0.0
    %842 = vmatpush1.xpose.msra.mxu0 0.0
    %843 = vmatprep.subr.mxu0 0.0
    %844 = vmatpush1.xpose.msra.mxu0 0.0
    %845 = vmatprep.subr.mxu0 0.0
    %846 = vmatpush1.xpose.msra.mxu0 0.0
    %847 = vmatprep.subr.mxu0 0.0
    %848 = vmatpush1.xpose.msra.mxu0 0.0
    %849 = vmatprep.subr.mxu0 0.0
    %850 = vmatpush1.xpose.msra.mxu0 0.0
    %851 = vmatprep.subr.mxu0 0.0
    %852 = vmatpush1.xpose.msra.mxu0 0.0
    %853 = vmatprep.subr.mxu0 0.0
    %854 = vmatpush1.xpose.msra.mxu0 0.0
    %855 = vmatprep.subr.mxu0 0.0
    %856 = vmatpush1.xpose.msra.mxu0 0.0
    %857 = vmatprep.subr.mxu0 0.0
    %858 = vmatpush1.xpose.msra.mxu0 0.0
    %859 = vmatprep.subr.mxu0 0.0
    %860 = vmatpush1.xpose.msra.mxu0 %v827
    %861 = vmatprep.subr.mxu0 0.0
    %862 = vmatpush2.xpose.msra.mxu0 0.0
    %863 = vmatprep.subr.mxu0 0.0
    %864 = vmatpush2.xpose.msra.mxu0 0.0
    %865 = vmatprep.subr.mxu0 0.0
    %866 = vmatpush2.xpose.msra.mxu0 0.0
    %867 = vmatprep.subr.mxu0 0.0
    %868 = vmatpush2.xpose.msra.mxu0 0.0
    %869 = vmatprep.subr.mxu0 0.0
    %870 = vmatpush2.xpose.msra.mxu0 0.0
    %871 = vmatprep.subr.mxu0 0.0
    %872 = vmatpush2.xpose.msra.mxu0 0.0
    %873 = vmatprep.subr.mxu0 0.0
    %874 = vmatpush2.xpose.msra.mxu0 0.0
    %875 = vmatprep.subr.mxu0 0.0
    %876 = vmatpush2.xpose.msra.mxu0 0.0
    %877 = vmatprep.subr.mxu0 0.0
    %878 = vmatpush2.xpose.msra.mxu0 0.0
    %879 = vmatprep.subr.mxu0 0.0
    %880 = vmatpush2.xpose.msra.mxu0 0.0
    %881 = vmatprep.subr.mxu0 0.0
    %882 = vmatpush2.xpose.msra.mxu0 0.0
    %883 = vmatprep.subr.mxu0 0.0
    %884 = vmatpush2.xpose.msra.mxu0 0.0
    %885 = vmatprep.subr.mxu0 0.0
    %886 = vmatpush2.xpose.msra.mxu0 0.0
    %887 = vmatprep.subr.mxu0 0.0
    %888 = vmatpush2.xpose.msra.mxu0 0.0
    %889 = vmatprep.subr.mxu0 0.0
    %890 = vmatpush2.xpose.msra.mxu0 0.0
    %891 = vmatprep.subr.mxu0 0.0
    %892 = vmatpush2.xpose.msra.mxu0 0.0
    %893 = vmatprep.mubr.f32.mxu0 0.0
    %894 = vmatmul.mubr.f32.gmra.mxu0 %v825
    %v895 = vpop.f32.mrf.mxu0
    %v896 = vadd.f32 0.0, %v895
    %v897 = vpop.f32.mrf.mxu0
    %898 = vdwg.mxu0
    %v899 = vsel %vm380, %v345, 0
    %v901 = vsel %vm380, %v359, 0
    %903 = vmatprep.subr.mxu0 0.0
    %904 = vmatpush1.xpose.msra.mxu0 0.0
    %905 = vmatprep.subr.mxu0 0.0
    %906 = vmatpush1.xpose.msra.mxu0 0.0
    %907 = vmatprep.subr.mxu0 0.0
    %908 = vmatpush1.xpose.msra.mxu0 0.0
    %909 = vmatprep.subr.mxu0 0.0
    %910 = vmatpush1.xpose.msra.mxu0 0.0
    %911 = vmatprep.subr.mxu0 0.0
    %912 = vmatpush1.xpose.msra.mxu0 0.0
    %913 = vmatprep.subr.mxu0 0.0
    %914 = vmatpush1.xpose.msra.mxu0 0.0
    %915 = vmatprep.subr.mxu0 0.0
    %916 = vmatpush1.xpose.msra.mxu0 0.0
    %917 = vmatprep.subr.mxu0 0.0
    %918 = vmatpush1.xpose.msra.mxu0 0.0
    %919 = vmatprep.subr.mxu0 0.0
    %920 = vmatpush1.xpose.msra.mxu0 0.0
    %921 = vmatprep.subr.mxu0 0.0
    %922 = vmatpush1.xpose.msra.mxu0 0.0
    %923 = vmatprep.subr.mxu0 0.0
    %924 = vmatpush1.xpose.msra.mxu0 0.0
    %925 = vmatprep.subr.mxu0 0.0
    %926 = vmatpush1.xpose.msra.mxu0 0.0
    %927 = vmatprep.subr.mxu0 0.0
    %928 = vmatpush1.xpose.msra.mxu0 0.0
    %929 = vmatprep.subr.mxu0 0.0
    %930 = vmatpush1.xpose.msra.mxu0 0.0
    %931 = vmatprep.subr.mxu0 0.0
    %932 = vmatpush1.xpose.msra.mxu0 0.0
    %933 = vmatprep.subr.mxu0 0.0
    %934 = vmatpush1.xpose.msra.mxu0 %v901
    %935 = vmatprep.subr.mxu0 0.0
    %936 = vmatpush2.xpose.msra.mxu0 0.0
    %937 = vmatprep.subr.mxu0 0.0
    %938 = vmatpush2.xpose.msra.mxu0 0.0
    %939 = vmatprep.subr.mxu0 0.0
    %940 = vmatpush2.xpose.msra.mxu0 0.0
    %941 = vmatprep.subr.mxu0 0.0
    %942 = vmatpush2.xpose.msra.mxu0 0.0
    %943 = vmatprep.subr.mxu0 0.0
    %944 = vmatpush2.xpose.msra.mxu0 0.0
    %945 = vmatprep.subr.mxu0 0.0
    %946 = vmatpush2.xpose.msra.mxu0 0.0
    %947 = vmatprep.subr.mxu0 0.0
    %948 = vmatpush2.xpose.msra.mxu0 0.0
    %949 = vmatprep.subr.mxu0 0.0
    %950 = vmatpush2.xpose.msra.mxu0 0.0
    %951 = vmatprep.subr.mxu0 0.0
    %952 = vmatpush2.xpose.msra.mxu0 0.0
    %953 = vmatprep.subr.mxu0 0.0
    %954 = vmatpush2.xpose.msra.mxu0 0.0
    %955 = vmatprep.subr.mxu0 0.0
    %956 = vmatpush2.xpose.msra.mxu0 0.0
    %957 = vmatprep.subr.mxu0 0.0
    %958 = vmatpush2.xpose.msra.mxu0 0.0
    %959 = vmatprep.subr.mxu0 0.0
    %960 = vmatpush2.xpose.msra.mxu0 0.0
    %961 = vmatprep.subr.mxu0 0.0
    %962 = vmatpush2.xpose.msra.mxu0 0.0
    %963 = vmatprep.subr.mxu0 0.0
    %964 = vmatpush2.xpose.msra.mxu0 0.0
    %965 = vmatprep.subr.mxu0 0.0
    %966 = vmatpush2.xpose.msra.mxu0 0.0
    %967 = vmatprep.mubr.f32.mxu0 0.0
    %968 = vmatmul.mubr.f32.gmra.mxu0 %v899
    %v969 = vpop.f32.mrf.mxu0
    %v970 = vadd.f32 0.0, %v969
    %v971 = vpop.f32.mrf.mxu0
    %972 = vdwg.mxu0
    %v973 = vsel %vm380, %v452, -inf
    %974 = vmax.xlane.f32.xlu0 %v973
    %v975 = vpop.xlane.xlu0 %974
    %v976 = vsel %vm380, %v526, -inf
    %977 = vmax.xlane.f32.xlu0 %v976
    %v978 = vpop.xlane.xlu0 %977
    %v979 = vsel %vm380, %v600, -inf
    %980 = vmax.xlane.f32.xlu0 %v979
    %v981 = vpop.xlane.xlu0 %980
    %v982 = vsel %vm380, %v674, -inf
    %983 = vmax.xlane.f32.xlu0 %v982
    %v984 = vpop.xlane.xlu0 %983
    %v985 = vsel %vm380, %v748, -inf
    %986 = vmax.xlane.f32.xlu0 %v985
    %v987 = vpop.xlane.xlu0 %986
    %v988 = vsel %vm380, %v822, -inf
    %989 = vmax.xlane.f32.xlu0 %v988
    %v990 = vpop.xlane.xlu0 %989
    %v991 = vsel %vm380, %v896, -inf
    %992 = vmax.xlane.f32.xlu0 %v991
    %v993 = vpop.xlane.xlu0 %992
    %v994 = vsel %vm380, %v970, -inf
    %995 = vmax.xlane.f32.xlu0 %v994
    %v996 = vpop.xlane.xlu0 %995
    %v997 = vsub.f32 %v452, %v975
    %v998 = vsub.f32 %v526, %v978
    %v999 = vsub.f32 %v600, %v981
    %v1000 = vsub.f32 %v674, %v984
    %v1001 = vsub.f32 %v748, %v987
    %v1002 = vsub.f32 %v822, %v990
    %v1003 = vsub.f32 %v896, %v993
    %v1004 = vsub.f32 %v970, %v996
    %v1005 = vmul.f32 %v997, 1.442695
    %v1006 = vpow.pop %v1005
    %v1007 = vmul.f32 %v998, 1.442695
    %v1008 = vpow.pop %v1007
    %v1009 = vmul.f32 %v999, 1.442695
    %v1010 = vpow.pop %v1009
    %v1011 = vmul.f32 %v1000, 1.442695
    %v1012 = vpow.pop %v1011
    %v1013 = vmul.f32 %v1001, 1.442695
    %v1014 = vpow.pop %v1013
    %v1015 = vmul.f32 %v1002, 1.442695
    %v1016 = vpow.pop %v1015
    %v1017 = vmul.f32 %v1003, 1.442695
    %v1018 = vpow.pop %v1017
    %v1019 = vmul.f32 %v1004, 1.442695
    %v1020 = vpow.pop %v1019
    %v1021 = vsel %vm380, %v1006, 0.0
    %1022 = vadd.xlane.f32.xlu0 %v1021
    %v1023 = vpop.xlane.xlu0 %1022
    %v1024 = vsel %vm380, %v1008, 0.0
    %1025 = vadd.xlane.f32.xlu0 %v1024
    %v1026 = vpop.xlane.xlu0 %1025
    %v1027 = vsel %vm380, %v1010, 0.0
    %1028 = vadd.xlane.f32.xlu0 %v1027
    %v1029 = vpop.xlane.xlu0 %1028
    %v1030 = vsel %vm380, %v1012, 0.0
    %1031 = vadd.xlane.f32.xlu0 %v1030
    %v1032 = vpop.xlane.xlu0 %1031
    %v1033 = vsel %vm380, %v1014, 0.0
    %1034 = vadd.xlane.f32.xlu0 %v1033
    %v1035 = vpop.xlane.xlu0 %1034
    %v1036 = vsel %vm380, %v1016, 0.0
    %1037 = vadd.xlane.f32.xlu0 %v1036
    %v1038 = vpop.xlane.xlu0 %1037
    %v1039 = vsel %vm380, %v1018, 0.0
    %1040 = vadd.xlane.f32.xlu0 %v1039
    %v1041 = vpop.xlane.xlu0 %1040
    %v1042 = vsel %vm380, %v1020, 0.0
    %1043 = vadd.xlane.f32.xlu0 %v1042
    %v1044 = vpop.xlane.xlu0 %1043
    %v1045 = vrcp.pop %v1023
    %v1046 = vmul.f32 %v1006, %v1045
    %v1047 = vrcp.pop %v1026
    %v1048 = vmul.f32 %v1008, %v1047
    %v1049 = vrcp.pop %v1029
    %v1050 = vmul.f32 %v1010, %v1049
    %v1051 = vrcp.pop %v1032
    %v1052 = vmul.f32 %v1012, %v1051
    %v1053 = vrcp.pop %v1035
    %v1054 = vmul.f32 %v1014, %v1053
    %v1055 = vrcp.pop %v1038
    %v1056 = vmul.f32 %v1016, %v1055
    %v1057 = vrcp.pop %v1041
    %v1058 = vmul.f32 %v1018, %v1057
    %v1059 = vrcp.pop %v1044
    %v1060 = vmul.f32 %v1020, %v1059
    %v1062 = vsel %vm380, %v1046, 0
    %1064 = vmatprep.subr.mxu0 0.0
    %1065 = vmatpush1.msra.mxu0 0.0
    %1066 = vmatprep.subr.mxu0 0.0
    %1067 = vmatpush1.msra.mxu0 0.0
    %1068 = vmatprep.subr.mxu0 0.0
    %1069 = vmatpush1.msra.mxu0 0.0
    %1070 = vmatprep.subr.mxu0 0.0
    %1071 = vmatpush1.msra.mxu0 0.0
    %1072 = vmatprep.subr.mxu0 0.0
    %1073 = vmatpush1.msra.mxu0 0.0
    %1074 = vmatprep.subr.mxu0 0.0
    %1075 = vmatpush1.msra.mxu0 0.0
    %1076 = vmatprep.subr.mxu0 0.0
    %1077 = vmatpush1.msra.mxu0 0.0
    %1078 = vmatprep.subr.mxu0 0.0
    %1079 = vmatpush1.msra.mxu0 0.0
    %1080 = vmatprep.subr.mxu0 0.0
    %1081 = vmatpush1.msra.mxu0 0.0
    %1082 = vmatprep.subr.mxu0 0.0
    %1083 = vmatpush1.msra.mxu0 0.0
    %1084 = vmatprep.subr.mxu0 0.0
    %1085 = vmatpush1.msra.mxu0 0.0
    %1086 = vmatprep.subr.mxu0 0.0
    %1087 = vmatpush1.msra.mxu0 0.0
    %1088 = vmatprep.subr.mxu0 0.0
    %1089 = vmatpush1.msra.mxu0 0.0
    %1090 = vmatprep.subr.mxu0 0.0
    %1091 = vmatpush1.msra.mxu0 0.0
    %1092 = vmatprep.subr.mxu0 0.0
    %1093 = vmatpush1.msra.mxu0 0.0
    %1094 = vmatprep.subr.mxu0 0.0
    %1095 = vmatpush1.msra.mxu0 %v324
    %1096 = vmatprep.subr.mxu0 0.0
    %1097 = vmatpush2.msra.mxu0 0.0
    %1098 = vmatprep.subr.mxu0 0.0
    %1099 = vmatpush2.msra.mxu0 0.0
    %1100 = vmatprep.subr.mxu0 0.0
    %1101 = vmatpush2.msra.mxu0 0.0
    %1102 = vmatprep.subr.mxu0 0.0
    %1103 = vmatpush2.msra.mxu0 0.0
    %1104 = vmatprep.subr.mxu0 0.0
    %1105 = vmatpush2.msra.mxu0 0.0
    %1106 = vmatprep.subr.mxu0 0.0
    %1107 = vmatpush2.msra.mxu0 0.0
    %1108 = vmatprep.subr.mxu0 0.0
    %1109 = vmatpush2.msra.mxu0 0.0
    %1110 = vmatprep.subr.mxu0 0.0
    %1111 = vmatpush2.msra.mxu0 0.0
    %1112 = vmatprep.subr.mxu0 0.0
    %1113 = vmatpush2.msra.mxu0 0.0
    %1114 = vmatprep.subr.mxu0 0.0
    %1115 = vmatpush2.msra.mxu0 0.0
    %1116 = vmatprep.subr.mxu0 0.0
    %1117 = vmatpush2.msra.mxu0 0.0
    %1118 = vmatprep.subr.mxu0 0.0
    %1119 = vmatpush2.msra.mxu0 0.0
    %1120 = vmatprep.subr.mxu0 0.0
    %1121 = vmatpush2.msra.mxu0 0.0
    %1122 = vmatprep.subr.mxu0 0.0
    %1123 = vmatpush2.msra.mxu0 0.0
    %1124 = vmatprep.subr.mxu0 0.0
    %1125 = vmatpush2.msra.mxu0 0.0
    %1126 = vmatprep.subr.mxu0 0.0
    %1127 = vmatpush2.msra.mxu0 0.0
    %1128 = vmatprep.mubr.f32.mxu0 0.0
    %1129 = vmatmul.mubr.f32.gmra.mxu0 %v1062
    %v1130 = vpop.f32.mrf.mxu0
    %v1131 = vadd.f32 0.0, %v1130
    %v1132 = vpop.f32.mrf.mxu0
    %1133 = vdwg.mxu0
    %v1135 = vsel %vm380, %v1048, 0
    %1137 = vmatprep.subr.mxu0 0.0
    %1138 = vmatpush1.msra.mxu0 0.0
    %1139 = vmatprep.subr.mxu0 0.0
    %1140 = vmatpush1.msra.mxu0 0.0
    %1141 = vmatprep.subr.mxu0 0.0
    %1142 = vmatpush1.msra.mxu0 0.0
    %1143 = vmatprep.subr.mxu0 0.0
    %1144 = vmatpush1.msra.mxu0 0.0
    %1145 = vmatprep.subr.mxu0 0.0
    %1146 = vmatpush1.msra.mxu0 0.0
    %1147 = vmatprep.subr.mxu0 0.0
    %1148 = vmatpush1.msra.mxu0 0.0
    %1149 = vmatprep.subr.mxu0 0.0
    %1150 = vmatpush1.msra.mxu0 0.0
    %1151 = vmatprep.subr.mxu0 0.0
    %1152 = vmatpush1.msra.mxu0 0.0
    %1153 = vmatprep.subr.mxu0 0.0
    %1154 = vmatpush1.msra.mxu0 0.0
    %1155 = vmatprep.subr.mxu0 0.0
    %1156 = vmatpush1.msra.mxu0 0.0
    %1157 = vmatprep.subr.mxu0 0.0
    %1158 = vmatpush1.msra.mxu0 0.0
    %1159 = vmatprep.subr.mxu0 0.0
    %1160 = vmatpush1.msra.mxu0 0.0
    %1161 = vmatprep.subr.mxu0 0.0
    %1162 = vmatpush1.msra.mxu0 0.0
    %1163 = vmatprep.subr.mxu0 0.0
    %1164 = vmatpush1.msra.mxu0 0.0
    %1165 = vmatprep.subr.mxu0 0.0
    %1166 = vmatpush1.msra.mxu0 0.0
    %1167 = vmatprep.subr.mxu0 0.0
    %1168 = vmatpush1.msra.mxu0 %v362
    %1169 = vmatprep.subr.mxu0 0.0
    %1170 = vmatpush2.msra.mxu0 0.0
    %1171 = vmatprep.subr.mxu0 0.0
    %1172 = vmatpush2.msra.mxu0 0.0
    %1173 = vmatprep.subr.mxu0 0.0
    %1174 = vmatpush2.msra.mxu0 0.0
    %1175 = vmatprep.subr.mxu0 0.0
    %1176 = vmatpush2.msra.mxu0 0.0
    %1177 = vmatprep.subr.mxu0 0.0
    %1178 = vmatpush2.msra.mxu0 0.0
    %1179 = vmatprep.subr.mxu0 0.0
    %1180 = vmatpush2.msra.mxu0 0.0
    %1181 = vmatprep.subr.mxu0 0.0
    %1182 = vmatpush2.msra.mxu0 0.0
    %1183 = vmatprep.subr.mxu0 0.0
    %1184 = vmatpush2.msra.mxu0 0.0
    %1185 = vmatprep.subr.mxu0 0.0
    %1186 = vmatpush2.msra.mxu0 0.0
    %1187 = vmatprep.subr.mxu0 0.0
    %1188 = vmatpush2.msra.mxu0 0.0
    %1189 = vmatprep.subr.mxu0 0.0
    %1190 = vmatpush2.msra.mxu0 0.0
    %1191 = vmatprep.subr.mxu0 0.0
    %1192 = vmatpush2.msra.mxu0 0.0
    %1193 = vmatprep.subr.mxu0 0.0
    %1194 = vmatpush2.msra.mxu0 0.0
    %1195 = vmatprep.subr.mxu0 0.0
    %1196 = vmatpush2.msra.mxu0 0.0
    %1197 = vmatprep.subr.mxu0 0.0
    %1198 = vmatpush2.msra.mxu0 0.0
    %1199 = vmatprep.subr.mxu0 0.0
    %1200 = vmatpush2.msra.mxu0 0.0
    %1201 = vmatprep.mubr.f32.mxu0 0.0
    %1202 = vmatmul.mubr.f32.gmra.mxu0 %v1135
    %v1203 = vpop.f32.mrf.mxu0
    %v1204 = vadd.f32 0.0, %v1203
    %v1205 = vpop.f32.mrf.mxu0
    %1206 = vdwg.mxu0
    %v1208 = vsel %vm380, %v1050, 0
    %1210 = vmatprep.subr.mxu0 0.0
    %1211 = vmatpush1.msra.mxu0 0.0
    %1212 = vmatprep.subr.mxu0 0.0
    %1213 = vmatpush1.msra.mxu0 0.0
    %1214 = vmatprep.subr.mxu0 0.0
    %1215 = vmatpush1.msra.mxu0 0.0
    %1216 = vmatprep.subr.mxu0 0.0
    %1217 = vmatpush1.msra.mxu0 0.0
    %1218 = vmatprep.subr.mxu0 0.0
    %1219 = vmatpush1.msra.mxu0 0.0
    %1220 = vmatprep.subr.mxu0 0.0
    %1221 = vmatpush1.msra.mxu0 0.0
    %1222 = vmatprep.subr.mxu0 0.0
    %1223 = vmatpush1.msra.mxu0 0.0
    %1224 = vmatprep.subr.mxu0 0.0
    %1225 = vmatpush1.msra.mxu0 0.0
    %1226 = vmatprep.subr.mxu0 0.0
    %1227 = vmatpush1.msra.mxu0 0.0
    %1228 = vmatprep.subr.mxu0 0.0
    %1229 = vmatpush1.msra.mxu0 0.0
    %1230 = vmatprep.subr.mxu0 0.0
    %1231 = vmatpush1.msra.mxu0 0.0
    %1232 = vmatprep.subr.mxu0 0.0
    %1233 = vmatpush1.msra.mxu0 0.0
    %1234 = vmatprep.subr.mxu0 0.0
    %1235 = vmatpush1.msra.mxu0 0.0
    %1236 = vmatprep.subr.mxu0 0.0
    %1237 = vmatpush1.msra.mxu0 0.0
    %1238 = vmatprep.subr.mxu0 0.0
    %1239 = vmatpush1.msra.mxu0 0.0
    %1240 = vmatprep.subr.mxu0 0.0
    %1241 = vmatpush1.msra.mxu0 %v365
    %1242 = vmatprep.subr.mxu0 0.0
    %1243 = vmatpush2.msra.mxu0 0.0
    %1244 = vmatprep.subr.mxu0 0.0
    %1245 = vmatpush2.msra.mxu0 0.0
    %1246 = vmatprep.subr.mxu0 0.0
    %1247 = vmatpush2.msra.mxu0 0.0
    %1248 = vmatprep.subr.mxu0 0.0
    %1249 = vmatpush2.msra.mxu0 0.0
    %1250 = vmatprep.subr.mxu0 0.0
    %1251 = vmatpush2.msra.mxu0 0.0
    %1252 = vmatprep.subr.mxu0 0.0
    %1253 = vmatpush2.msra.mxu0 0.0
    %1254 = vmatprep.subr.mxu0 0.0
    %1255 = vmatpush2.msra.mxu0 0.0
    %1256 = vmatprep.subr.mxu0 0.0
    %1257 = vmatpush2.msra.mxu0 0.0
    %1258 = vmatprep.subr.mxu0 0.0
    %1259 = vmatpush2.msra.mxu0 0.0
    %1260 = vmatprep.subr.mxu0 0.0
    %1261 = vmatpush2.msra.mxu0 0.0
    %1262 = vmatprep.subr.mxu0 0.0
    %1263 = vmatpush2.msra.mxu0 0.0
    %1264 = vmatprep.subr.mxu0 0.0
    %1265 = vmatpush2.msra.mxu0 0.0
    %1266 = vmatprep.subr.mxu0 0.0
    %1267 = vmatpush2.msra.mxu0 0.0
    %1268 = vmatprep.subr.mxu0 0.0
    %1269 = vmatpush2.msra.mxu0 0.0
    %1270 = vmatprep.subr.mxu0 0.0
    %1271 = vmatpush2.msra.mxu0 0.0
    %1272 = vmatprep.subr.mxu0 0.0
    %1273 = vmatpush2.msra.mxu0 0.0
    %1274 = vmatprep.mubr.f32.mxu0 0.0
    %1275 = vmatmul.mubr.f32.gmra.mxu0 %v1208
    %v1276 = vpop.f32.mrf.mxu0
    %v1277 = vadd.f32 0.0, %v1276
    %v1278 = vpop.f32.mrf.mxu0
    %1279 = vdwg.mxu0
    %v1281 = vsel %vm380, %v1052, 0
    %1283 = vmatprep.subr.mxu0 0.0
    %1284 = vmatpush1.msra.mxu0 0.0
    %1285 = vmatprep.subr.mxu0 0.0
    %1286 = vmatpush1.msra.mxu0 0.0
    %1287 = vmatprep.subr.mxu0 0.0
    %1288 = vmatpush1.msra.mxu0 0.0
    %1289 = vmatprep.subr.mxu0 0.0
    %1290 = vmatpush1.msra.mxu0 0.0
    %1291 = vmatprep.subr.mxu0 0.0
    %1292 = vmatpush1.msra.mxu0 0.0
    %1293 = vmatprep.subr.mxu0 0.0
    %1294 = vmatpush1.msra.mxu0 0.0
    %1295 = vmatprep.subr.mxu0 0.0
    %1296 = vmatpush1.msra.mxu0 0.0
    %1297 = vmatprep.subr.mxu0 0.0
    %1298 = vmatpush1.msra.mxu0 0.0
    %1299 = vmatprep.subr.mxu0 0.0
    %1300 = vmatpush1.msra.mxu0 0.0
    %1301 = vmatprep.subr.mxu0 0.0
    %1302 = vmatpush1.msra.mxu0 0.0
    %1303 = vmatprep.subr.mxu0 0.0
    %1304 = vmatpush1.msra.mxu0 0.0
    %1305 = vmatprep.subr.mxu0 0.0
    %1306 = vmatpush1.msra.mxu0 0.0
    %1307 = vmatprep.subr.mxu0 0.0
    %1308 = vmatpush1.msra.mxu0 0.0
    %1309 = vmatprep.subr.mxu0 0.0
    %1310 = vmatpush1.msra.mxu0 0.0
    %1311 = vmatprep.subr.mxu0 0.0
    %1312 = vmatpush1.msra.mxu0 0.0
    %1313 = vmatprep.subr.mxu0 0.0
    %1314 = vmatpush1.msra.mxu0 %v368
    %1315 = vmatprep.subr.mxu0 0.0
    %1316 = vmatpush2.msra.mxu0 0.0
    %1317 = vmatprep.subr.mxu0 0.0
    %1318 = vmatpush2.msra.mxu0 0.0
    %1319 = vmatprep.subr.mxu0 0.0
    %1320 = vmatpush2.msra.mxu0 0.0
    %1321 = vmatprep.subr.mxu0 0.0
    %1322 = vmatpush2.msra.mxu0 0.0
    %1323 = vmatprep.subr.mxu0 0.0
    %1324 = vmatpush2.msra.mxu0 0.0
    %1325 = vmatprep.subr.mxu0 0.0
    %1326 = vmatpush2.msra.mxu0 0.0
    %1327 = vmatprep.subr.mxu0 0.0
    %1328 = vmatpush2.msra.mxu0 0.0
    %1329 = vmatprep.subr.mxu0 0.0
    %1330 = vmatpush2.msra.mxu0 0.0
    %1331 = vmatprep.subr.mxu0 0.0
    %1332 = vmatpush2.msra.mxu0 0.0
    %1333 = vmatprep.subr.mxu0 0.0
    %1334 = vmatpush2.msra.mxu0 0.0
    %1335 = vmatprep.subr.mxu0 0.0
    %1336 = vmatpush2.msra.mxu0 0.0
    %1337 = vmatprep.subr.mxu0 0.0
    %1338 = vmatpush2.msra.mxu0 0.0
    %1339 = vmatprep.subr.mxu0 0.0
    %1340 = vmatpush2.msra.mxu0 0.0
    %1341 = vmatprep.subr.mxu0 0.0
    %1342 = vmatpush2.msra.mxu0 0.0
    %1343 = vmatprep.subr.mxu0 0.0
    %1344 = vmatpush2.msra.mxu0 0.0
    %1345 = vmatprep.subr.mxu0 0.0
    %1346 = vmatpush2.msra.mxu0 0.0
    %1347 = vmatprep.mubr.f32.mxu0 0.0
    %1348 = vmatmul.mubr.f32.gmra.mxu0 %v1281
    %v1349 = vpop.f32.mrf.mxu0
    %v1350 = vadd.f32 0.0, %v1349
    %v1351 = vpop.f32.mrf.mxu0
    %1352 = vdwg.mxu0
    %v1354 = vsel %vm380, %v1054, 0
    %1356 = vmatprep.subr.mxu0 0.0
    %1357 = vmatpush1.msra.mxu0 0.0
    %1358 = vmatprep.subr.mxu0 0.0
    %1359 = vmatpush1.msra.mxu0 0.0
    %1360 = vmatprep.subr.mxu0 0.0
    %1361 = vmatpush1.msra.mxu0 0.0
    %1362 = vmatprep.subr.mxu0 0.0
    %1363 = vmatpush1.msra.mxu0 0.0
    %1364 = vmatprep.subr.mxu0 0.0
    %1365 = vmatpush1.msra.mxu0 0.0
    %1366 = vmatprep.subr.mxu0 0.0
    %1367 = vmatpush1.msra.mxu0 0.0
    %1368 = vmatprep.subr.mxu0 0.0
    %1369 = vmatpush1.msra.mxu0 0.0
    %1370 = vmatprep.subr.mxu0 0.0
    %1371 = vmatpush1.msra.mxu0 0.0
    %1372 = vmatprep.subr.mxu0 0.0
    %1373 = vmatpush1.msra.mxu0 0.0
    %1374 = vmatprep.subr.mxu0 0.0
    %1375 = vmatpush1.msra.mxu0 0.0
    %1376 = vmatprep.subr.mxu0 0.0
    %1377 = vmatpush1.msra.mxu0 0.0
    %1378 = vmatprep.subr.mxu0 0.0
    %1379 = vmatpush1.msra.mxu0 0.0
    %1380 = vmatprep.subr.mxu0 0.0
    %1381 = vmatpush1.msra.mxu0 0.0
    %1382 = vmatprep.subr.mxu0 0.0
    %1383 = vmatpush1.msra.mxu0 0.0
    %1384 = vmatprep.subr.mxu0 0.0
    %1385 = vmatpush1.msra.mxu0 0.0
    %1386 = vmatprep.subr.mxu0 0.0
    %1387 = vmatpush1.msra.mxu0 %v329
    %1388 = vmatprep.subr.mxu0 0.0
    %1389 = vmatpush2.msra.mxu0 0.0
    %1390 = vmatprep.subr.mxu0 0.0
    %1391 = vmatpush2.msra.mxu0 0.0
    %1392 = vmatprep.subr.mxu0 0.0
    %1393 = vmatpush2.msra.mxu0 0.0
    %1394 = vmatprep.subr.mxu0 0.0
    %1395 = vmatpush2.msra.mxu0 0.0
    %1396 = vmatprep.subr.mxu0 0.0
    %1397 = vmatpush2.msra.mxu0 0.0
    %1398 = vmatprep.subr.mxu0 0.0
    %1399 = vmatpush2.msra.mxu0 0.0
    %1400 = vmatprep.subr.mxu0 0.0
    %1401 = vmatpush2.msra.mxu0 0.0
    %1402 = vmatprep.subr.mxu0 0.0
    %1403 = vmatpush2.msra.mxu0 0.0
    %1404 = vmatprep.subr.mxu0 0.0
    %1405 = vmatpush2.msra.mxu0 0.0
    %1406 = vmatprep.subr.mxu0 0.0
    %1407 = vmatpush2.msra.mxu0 0.0
    %1408 = vmatprep.subr.mxu0 0.0
    %1409 = vmatpush2.msra.mxu0 0.0
    %1410 = vmatprep.subr.mxu0 0.0
    %1411 = vmatpush2.msra.mxu0 0.0
    %1412 = vmatprep.subr.mxu0 0.0
    %1413 = vmatpush2.msra.mxu0 0.0
    %1414 = vmatprep.subr.mxu0 0.0
    %1415 = vmatpush2.msra.mxu0 0.0
    %1416 = vmatprep.subr.mxu0 0.0
    %1417 = vmatpush2.msra.mxu0 0.0
    %1418 = vmatprep.subr.mxu0 0.0
    %1419 = vmatpush2.msra.mxu0 0.0
    %1420 = vmatprep.mubr.f32.mxu0 0.0
    %1421 = vmatmul.mubr.f32.gmra.mxu0 %v1354
    %v1422 = vpop.f32.mrf.mxu0
    %v1423 = vadd.f32 0.0, %v1422
    %v1424 = vpop.f32.mrf.mxu0
    %1425 = vdwg.mxu0
    %v1427 = vsel %vm380, %v1056, 0
    %1429 = vmatprep.subr.mxu0 0.0
    %1430 = vmatpush1.msra.mxu0 0.0
    %1431 = vmatprep.subr.mxu0 0.0
    %1432 = vmatpush1.msra.mxu0 0.0
    %1433 = vmatprep.subr.mxu0 0.0
    %1434 = vmatpush1.msra.mxu0 0.0
    %1435 = vmatprep.subr.mxu0 0.0
    %1436 = vmatpush1.msra.mxu0 0.0
    %1437 = vmatprep.subr.mxu0 0.0
    %1438 = vmatpush1.msra.mxu0 0.0
    %1439 = vmatprep.subr.mxu0 0.0
    %1440 = vmatpush1.msra.mxu0 0.0
    %1441 = vmatprep.subr.mxu0 0.0
    %1442 = vmatpush1.msra.mxu0 0.0
    %1443 = vmatprep.subr.mxu0 0.0
    %1444 = vmatpush1.msra.mxu0 0.0
    %1445 = vmatprep.subr.mxu0 0.0
    %1446 = vmatpush1.msra.mxu0 0.0
    %1447 = vmatprep.subr.mxu0 0.0
    %1448 = vmatpush1.msra.mxu0 0.0
    %1449 = vmatprep.subr.mxu0 0.0
    %1450 = vmatpush1.msra.mxu0 0.0
    %1451 = vmatprep.subr.mxu0 0.0
    %1452 = vmatpush1.msra.mxu0 0.0
    %1453 = vmatprep.subr.mxu0 0.0
    %1454 = vmatpush1.msra.mxu0 0.0
    %1455 = vmatprep.subr.mxu0 0.0
    %1456 = vmatpush1.msra.mxu0 0.0
    %1457 = vmatprep.subr.mxu0 0.0
    %1458 = vmatpush1.msra.mxu0 0.0
    %1459 = vmatprep.subr.mxu0 0.0
    %1460 = vmatpush1.msra.mxu0 %v372
    %1461 = vmatprep.subr.mxu0 0.0
    %1462 = vmatpush2.msra.mxu0 0.0
    %1463 = vmatprep.subr.mxu0 0.0
    %1464 = vmatpush2.msra.mxu0 0.0
    %1465 = vmatprep.subr.mxu0 0.0
    %1466 = vmatpush2.msra.mxu0 0.0
    %1467 = vmatprep.subr.mxu0 0.0
    %1468 = vmatpush2.msra.mxu0 0.0
    %1469 = vmatprep.subr.mxu0 0.0
    %1470 = vmatpush2.msra.mxu0 0.0
    %1471 = vmatprep.subr.mxu0 0.0
    %1472 = vmatpush2.msra.mxu0 0.0
    %1473 = vmatprep.subr.mxu0 0.0
    %1474 = vmatpush2.msra.mxu0 0.0
    %1475 = vmatprep.subr.mxu0 0.0
    %1476 = vmatpush2.msra.mxu0 0.0
    %1477 = vmatprep.subr.mxu0 0.0
    %1478 = vmatpush2.msra.mxu0 0.0
    %1479 = vmatprep.subr.mxu0 0.0
    %1480 = vmatpush2.msra.mxu0 0.0
    %1481 = vmatprep.subr.mxu0 0.0
    %1482 = vmatpush2.msra.mxu0 0.0
    %1483 = vmatprep.subr.mxu0 0.0
    %1484 = vmatpush2.msra.mxu0 0.0
    %1485 = vmatprep.subr.mxu0 0.0
    %1486 = vmatpush2.msra.mxu0 0.0
    %1487 = vmatprep.subr.mxu0 0.0
    %1488 = vmatpush2.msra.mxu0 0.0
    %1489 = vmatprep.subr.mxu0 0.0
    %1490 = vmatpush2.msra.mxu0 0.0
    %1491 = vmatprep.subr.mxu0 0.0
    %1492 = vmatpush2.msra.mxu0 0.0
    %1493 = vmatprep.mubr.f32.mxu0 0.0
    %1494 = vmatmul.mubr.f32.gmra.mxu0 %v1427
    %v1495 = vpop.f32.mrf.mxu0
    %v1496 = vadd.f32 0.0, %v1495
    %v1497 = vpop.f32.mrf.mxu0
    %1498 = vdwg.mxu0
    %v1500 = vsel %vm380, %v1058, 0
    %1502 = vmatprep.subr.mxu0 0.0
    %1503 = vmatpush1.msra.mxu0 0.0
    %1504 = vmatprep.subr.mxu0 0.0
    %1505 = vmatpush1.msra.mxu0 0.0
    %1506 = vmatprep.subr.mxu0 0.0
    %1507 = vmatpush1.msra.mxu0 0.0
    %1508 = vmatprep.subr.mxu0 0.0
    %1509 = vmatpush1.msra.mxu0 0.0
    %1510 = vmatprep.subr.mxu0 0.0
    %1511 = vmatpush1.msra.mxu0 0.0
    %1512 = vmatprep.subr.mxu0 0.0
    %1513 = vmatpush1.msra.mxu0 0.0
    %1514 = vmatprep.subr.mxu0 0.0
    %1515 = vmatpush1.msra.mxu0 0.0
    %1516 = vmatprep.subr.mxu0 0.0
    %1517 = vmatpush1.msra.mxu0 0.0
    %1518 = vmatprep.subr.mxu0 0.0
    %1519 = vmatpush1.msra.mxu0 0.0
    %1520 = vmatprep.subr.mxu0 0.0
    %1521 = vmatpush1.msra.mxu0 0.0
    %1522 = vmatprep.subr.mxu0 0.0
    %1523 = vmatpush1.msra.mxu0 0.0
    %1524 = vmatprep.subr.mxu0 0.0
    %1525 = vmatpush1.msra.mxu0 0.0
    %1526 = vmatprep.subr.mxu0 0.0
    %1527 = vmatpush1.msra.mxu0 0.0
    %1528 = vmatprep.subr.mxu0 0.0
    %1529 = vmatpush1.msra.mxu0 0.0
    %1530 = vmatprep.subr.mxu0 0.0
    %1531 = vmatpush1.msra.mxu0 0.0
    %1532 = vmatprep.subr.mxu0 0.0
    %1533 = vmatpush1.msra.mxu0 %v375
    %1534 = vmatprep.subr.mxu0 0.0
    %1535 = vmatpush2.msra.mxu0 0.0
    %1536 = vmatprep.subr.mxu0 0.0
    %1537 = vmatpush2.msra.mxu0 0.0
    %1538 = vmatprep.subr.mxu0 0.0
    %1539 = vmatpush2.msra.mxu0 0.0
    %1540 = vmatprep.subr.mxu0 0.0
    %1541 = vmatpush2.msra.mxu0 0.0
    %1542 = vmatprep.subr.mxu0 0.0
    %1543 = vmatpush2.msra.mxu0 0.0
    %1544 = vmatprep.subr.mxu0 0.0
    %1545 = vmatpush2.msra.mxu0 0.0
    %1546 = vmatprep.subr.mxu0 0.0
    %1547 = vmatpush2.msra.mxu0 0.0
    %1548 = vmatprep.subr.mxu0 0.0
    %1549 = vmatpush2.msra.mxu0 0.0
    %1550 = vmatprep.subr.mxu0 0.0
    %1551 = vmatpush2.msra.mxu0 0.0
    %1552 = vmatprep.subr.mxu0 0.0
    %1553 = vmatpush2.msra.mxu0 0.0
    %1554 = vmatprep.subr.mxu0 0.0
    %1555 = vmatpush2.msra.mxu0 0.0
    %1556 = vmatprep.subr.mxu0 0.0
    %1557 = vmatpush2.msra.mxu0 0.0
    %1558 = vmatprep.subr.mxu0 0.0
    %1559 = vmatpush2.msra.mxu0 0.0
    %1560 = vmatprep.subr.mxu0 0.0
    %1561 = vmatpush2.msra.mxu0 0.0
    %1562 = vmatprep.subr.mxu0 0.0
    %1563 = vmatpush2.msra.mxu0 0.0
    %1564 = vmatprep.subr.mxu0 0.0
    %1565 = vmatpush2.msra.mxu0 0.0
    %1566 = vmatprep.mubr.f32.mxu0 0.0
    %1567 = vmatmul.mubr.f32.gmra.mxu0 %v1500
    %v1568 = vpop.f32.mrf.mxu0
    %v1569 = vadd.f32 0.0, %v1568
    %v1570 = vpop.f32.mrf.mxu0
    %1571 = vdwg.mxu0
    %v1573 = vsel %vm380, %v1060, 0
    %1575 = vmatprep.subr.mxu0 0.0
    %1576 = vmatpush1.msra.mxu0 0.0
    %1577 = vmatprep.subr.mxu0 0.0
    %1578 = vmatpush1.msra.mxu0 0.0
    %1579 = vmatprep.subr.mxu0 0.0
    %1580 = vmatpush1.msra.mxu0 0.0
    %1581 = vmatprep.subr.mxu0 0.0
    %1582 = vmatpush1.msra.mxu0 0.0
    %1583 = vmatprep.subr.mxu0 0.0
    %1584 = vmatpush1.msra.mxu0 0.0
    %1585 = vmatprep.subr.mxu0 0.0
    %1586 = vmatpush1.msra.mxu0 0.0
    %1587 = vmatprep.subr.mxu0 0.0
    %1588 = vmatpush1.msra.mxu0 0.0
    %1589 = vmatprep.subr.mxu0 0.0
    %1590 = vmatpush1.msra.mxu0 0.0
    %1591 = vmatprep.subr.mxu0 0.0
    %1592 = vmatpush1.msra.mxu0 0.0
    %1593 = vmatprep.subr.mxu0 0.0
    %1594 = vmatpush1.msra.mxu0 0.0
    %1595 = vmatprep.subr.mxu0 0.0
    %1596 = vmatpush1.msra.mxu0 0.0
    %1597 = vmatprep.subr.mxu0 0.0
    %1598 = vmatpush1.msra.mxu0 0.0
    %1599 = vmatprep.subr.mxu0 0.0
    %1600 = vmatpush1.msra.mxu0 0.0
    %1601 = vmatprep.subr.mxu0 0.0
    %1602 = vmatpush1.msra.mxu0 0.0
    %1603 = vmatprep.subr.mxu0 0.0
    %1604 = vmatpush1.msra.mxu0 0.0
    %1605 = vmatprep.subr.mxu0 0.0
    %1606 = vmatpush1.msra.mxu0 %v378
    %1607 = vmatprep.subr.mxu0 0.0
    %1608 = vmatpush2.msra.mxu0 0.0
    %1609 = vmatprep.subr.mxu0 0.0
    %1610 = vmatpush2.msra.mxu0 0.0
    %1611 = vmatprep.subr.mxu0 0.0
    %1612 = vmatpush2.msra.mxu0 0.0
    %1613 = vmatprep.subr.mxu0 0.0
    %1614 = vmatpush2.msra.mxu0 0.0
    %1615 = vmatprep.subr.mxu0 0.0
    %1616 = vmatpush2.msra.mxu0 0.0
    %1617 = vmatprep.subr.mxu0 0.0
    %1618 = vmatpush2.msra.mxu0 0.0
    %1619 = vmatprep.subr.mxu0 0.0
    %1620 = vmatpush2.msra.mxu0 0.0
    %1621 = vmatprep.subr.mxu0 0.0
    %1622 = vmatpush2.msra.mxu0 0.0
    %1623 = vmatprep.subr.mxu0 0.0
    %1624 = vmatpush2.msra.mxu0 0.0
    %1625 = vmatprep.subr.mxu0 0.0
    %1626 = vmatpush2.msra.mxu0 0.0
    %1627 = vmatprep.subr.mxu0 0.0
    %1628 = vmatpush2.msra.mxu0 0.0
    %1629 = vmatprep.subr.mxu0 0.0
    %1630 = vmatpush2.msra.mxu0 0.0
    %1631 = vmatprep.subr.mxu0 0.0
    %1632 = vmatpush2.msra.mxu0 0.0
    %1633 = vmatprep.subr.mxu0 0.0
    %1634 = vmatpush2.msra.mxu0 0.0
    %1635 = vmatprep.subr.mxu0 0.0
    %1636 = vmatpush2.msra.mxu0 0.0
    %1637 = vmatprep.subr.mxu0 0.0
    %1638 = vmatpush2.msra.mxu0 0.0
    %1639 = vmatprep.mubr.f32.mxu0 0.0
    %1640 = vmatmul.mubr.f32.gmra.mxu0 %v1573
    %v1641 = vpop.f32.mrf.mxu0
    %v1642 = vadd.f32 0.0, %v1641
    %v1643 = vpop.f32.mrf.mxu0
    %1644 = vdwg.mxu0
    %1646 = vrot.lane.b32.xlu0 %v1204, 8
    %v1647 = vpop.permute.xlu0 %1646
    %1650 = vrot.lane.b32.xlu0 %v1277, 16
    %v1651 = vpop.permute.xlu0 %1650
    %1654 = vrot.lane.b32.xlu0 %v1350, 24
    %v1655 = vpop.permute.xlu0 %1654
    %v1657 = vsel %vm380, %v1131, %v1647
    %vm1658 = vcmask 130048
    %v1659 = vsel %vm1658, %v1657, %v1651
    %vm1660 = vcmask 195584
    %v1661 = vsel %vm1660, %v1659, %v1655
    %1663 = vrot.lane.b32.xlu0 %v1496, 8
    %v1664 = vpop.permute.xlu0 %1663
    %1667 = vrot.lane.b32.xlu0 %v1569, 16
    %v1668 = vpop.permute.xlu0 %1667
    %1671 = vrot.lane.b32.xlu0 %v1642, 24
    %v1672 = vpop.permute.xlu0 %1671
    %v1674 = vsel %vm380, %v1423, %v1664
    %v1675 = vsel %vm1658, %v1674, %v1668
    %v1676 = vsel %vm1660, %v1675, %v1672
    %v1677 = vld [vmem:[%s4] sm:$0xff]
    %v1678 = vld [vmem:[%s4 + $0x8] sm:$0xff]
    %v1679 = vld [vmem:[%s4 + $0x10] sm:$0xff]
    %v1680 = vld [vmem:[%s4 + $0x18] sm:$0xff]
    %v1682 = vsel %vm51, %v1661, 0
    %v1685 = vsel %vm51, %v1676, 0
    %1687 = vmatprep.subr.mxu0 0.0
    %1688 = vmatpush1.msra.mxu0 0.0
    %1689 = vmatprep.subr.mxu0 0.0
    %1690 = vmatpush1.msra.mxu0 0.0
    %1691 = vmatprep.subr.mxu0 0.0
    %1692 = vmatpush1.msra.mxu0 0.0
    %1693 = vmatprep.subr.mxu0 0.0
    %1694 = vmatpush1.msra.mxu0 0.0
    %1695 = vmatprep.subr.mxu0 0.0
    %1696 = vmatpush1.msra.mxu0 0.0
    %1697 = vmatprep.subr.mxu0 0.0
    %1698 = vmatpush1.msra.mxu0 0.0
    %1699 = vmatprep.subr.mxu0 0.0
    %1700 = vmatpush1.msra.mxu0 0.0
    %1701 = vmatprep.subr.mxu0 0.0
    %1702 = vmatpush1.msra.mxu0 0.0
    %1703 = vmatprep.subr.mxu0 0.0
    %1704 = vmatpush1.msra.mxu0 0.0
    %1705 = vmatprep.subr.mxu0 0.0
    %1706 = vmatpush1.msra.mxu0 0.0
    %1707 = vmatprep.subr.mxu0 0.0
    %1708 = vmatpush1.msra.mxu0 0.0
    %1709 = vmatprep.subr.mxu0 0.0
    %1710 = vmatpush1.msra.mxu0 0.0
    %1711 = vmatprep.subr.mxu0 0.0
    %1712 = vmatpush1.msra.mxu0 %v1680
    %1713 = vmatprep.subr.mxu0 0.0
    %1714 = vmatpush1.msra.mxu0 %v1679
    %1715 = vmatprep.subr.mxu0 0.0
    %1716 = vmatpush1.msra.mxu0 %v1678
    %1717 = vmatprep.subr.mxu0 0.0
    %1718 = vmatpush1.msra.mxu0 %v1677
    %1719 = vmatprep.subr.mxu0 0.0
    %1720 = vmatpush2.msra.mxu0 0.0
    %1721 = vmatprep.subr.mxu0 0.0
    %1722 = vmatpush2.msra.mxu0 0.0
    %1723 = vmatprep.subr.mxu0 0.0
    %1724 = vmatpush2.msra.mxu0 0.0
    %1725 = vmatprep.subr.mxu0 0.0
    %1726 = vmatpush2.msra.mxu0 0.0
    %1727 = vmatprep.subr.mxu0 0.0
    %1728 = vmatpush2.msra.mxu0 0.0
    %1729 = vmatprep.subr.mxu0 0.0
    %1730 = vmatpush2.msra.mxu0 0.0
    %1731 = vmatprep.subr.mxu0 0.0
    %1732 = vmatpush2.msra.mxu0 0.0
    %1733 = vmatprep.subr.mxu0 0.0
    %1734 = vmatpush2.msra.mxu0 0.0
    %1735 = vmatprep.subr.mxu0 0.0
    %1736 = vmatpush2.msra.mxu0 0.0
    %1737 = vmatprep.subr.mxu0 0.0
    %1738 = vmatpush2.msra.mxu0 0.0
    %1739 = vmatprep.subr.mxu0 0.0
    %1740 = vmatpush2.msra.mxu0 0.0
    %1741 = vmatprep.subr.mxu0 0.0
    %1742 = vmatpush2.msra.mxu0 0.0
    %1743 = vmatprep.subr.mxu0 0.0
    %1744 = vmatpush2.msra.mxu0 0.0
    %1745 = vmatprep.subr.mxu0 0.0
    %1746 = vmatpush2.msra.mxu0 0.0
    %1747 = vmatprep.subr.mxu0 0.0
    %1748 = vmatpush2.msra.mxu0 0.0
    %1749 = vmatprep.subr.mxu0 0.0
    %1750 = vmatpush2.msra.mxu0 0.0
    %1751 = vmatprep.mubr.f32.mxu0 0.0
    %1752 = vmatmul.mubr.f32.gmra.mxu0 %v1682
    %v1753 = vpop.f32.mrf.mxu0
    %v1754 = vadd.f32 0.0, %v1753
    %v1755 = vpop.f32.mrf.mxu0
    %1756 = vmatprep.mubr.f32.mxu0 0.0
    %1757 = vmatmul.mubr.f32.gmra.mxu0 %v1685
    %v1758 = vpop.f32.mrf.mxu0
    %v1759 = vadd.f32 0.0, %v1758
    %v1760 = vpop.f32.mrf.mxu0
    %1761 = vdwg.mxu0
    %v1762 = vadd.f32 %v47, %v1754
    %v1763 = vadd.f32 %v48, %v1759
    %v1764 = vsel %vm51, %v1762, 0.0
    %1765 = vadd.xlane.f32.xlu0 %v1764
    %v1766 = vpop.xlane.xlu0 %1765
    %v1767 = vsel %vm51, %v1763, 0.0
    %1768 = vadd.xlane.f32.xlu0 %v1767
    %v1769 = vpop.xlane.xlu0 %1768
    %v1770 = vmul.f32 %v1766, %v58
    %v1771 = vmul.f32 %v1769, %v58
    %v1772 = vsub.f32 %v1762, %v1770
    %v1773 = vsub.f32 %v1763, %v1771
    %v1774 = vmul.f32 %v1772, %v1772
    %v1775 = vmul.f32 %v1773, %v1773
    %v1776 = vsel %vm51, %v1774, 0.0
    %1777 = vadd.xlane.f32.xlu0 %v1776
    %v1778 = vpop.xlane.xlu0 %1777
    %v1779 = vsel %vm51, %v1775, 0.0
    %1780 = vadd.xlane.f32.xlu0 %v1779
    %v1781 = vpop.xlane.xlu0 %1780
    %v1782 = vmul.f32 %v1778, %v58
    %v1783 = vmul.f32 %v1781, %v58
    %v1784 = vadd.f32 %v1782, 1e-05
    %v1785 = vadd.f32 %v1783, 1e-05
    %v1786 = vrsqrt.pop %v1784
    %v1787 = vrsqrt.pop %v1785
    %v1788 = vmul.f32 %v1772, %v1786
    %v1789 = vmul.f32 %v1773, %v1787
    %v1791 = vlaneseq
    %v1792 = vshrl.u32 %v1791, 7
    %v1793 = vsub.s32 0, %v1792
    %v1794 = vrot.slane %v50, %v1793
    %v1796 = vmul.f32 %v1788, %v1794
    %v1797 = vmul.f32 %v1789, %v1794
    %v1798 = vld [vmem:[%s7] sm:$0xff]
    %v1799 = vld [vmem:[%s7 + $0x8] sm:$0xff]
    %v1800 = vld [vmem:[%s7 + $0x10] sm:$0xff]
    %v1801 = vld [vmem:[%s7 + $0x18] sm:$0xff]
    %v1803 = vsel %vm51, %v1796, 0
    %v1806 = vsel %vm51, %v1797, 0
    %1808 = vmatprep.subr.mxu0 0.0
    %1809 = vmatpush1.msra.mxu0 0.0
    %1810 = vmatprep.subr.mxu0 0.0
    %1811 = vmatpush1.msra.mxu0 0.0
    %1812 = vmatprep.subr.mxu0 0.0
    %1813 = vmatpush1.msra.mxu0 0.0
    %1814 = vmatprep.subr.mxu0 0.0
    %1815 = vmatpush1.msra.mxu0 0.0
    %1816 = vmatprep.subr.mxu0 0.0
    %1817 = vmatpush1.msra.mxu0 0.0
    %1818 = vmatprep.subr.mxu0 0.0
    %1819 = vmatpush1.msra.mxu0 0.0
    %1820 = vmatprep.subr.mxu0 0.0
    %1821 = vmatpush1.msra.mxu0 0.0
    %1822 = vmatprep.subr.mxu0 0.0
    %1823 = vmatpush1.msra.mxu0 0.0
    %1824 = vmatprep.subr.mxu0 0.0
    %1825 = vmatpush1.msra.mxu0 0.0
    %1826 = vmatprep.subr.mxu0 0.0
    %1827 = vmatpush1.msra.mxu0 0.0
    %1828 = vmatprep.subr.mxu0 0.0
    %1829 = vmatpush1.msra.mxu0 0.0
    %1830 = vmatprep.subr.mxu0 0.0
    %1831 = vmatpush1.msra.mxu0 0.0
    %1832 = vmatprep.subr.mxu0 0.0
    %1833 = vmatpush1.msra.mxu0 %v1801
    %1834 = vmatprep.subr.mxu0 0.0
    %1835 = vmatpush1.msra.mxu0 %v1800
    %1836 = vmatprep.subr.mxu0 0.0
    %1837 = vmatpush1.msra.mxu0 %v1799
    %1838 = vmatprep.subr.mxu0 0.0
    %1839 = vmatpush1.msra.mxu0 %v1798
    %1840 = vmatprep.subr.mxu0 0.0
    %1841 = vmatpush2.msra.mxu0 0.0
    %1842 = vmatprep.subr.mxu0 0.0
    %1843 = vmatpush2.msra.mxu0 0.0
    %1844 = vmatprep.subr.mxu0 0.0
    %1845 = vmatpush2.msra.mxu0 0.0
    %1846 = vmatprep.subr.mxu0 0.0
    %1847 = vmatpush2.msra.mxu0 0.0
    %1848 = vmatprep.subr.mxu0 0.0
    %1849 = vmatpush2.msra.mxu0 0.0
    %1850 = vmatprep.subr.mxu0 0.0
    %1851 = vmatpush2.msra.mxu0 0.0
    %1852 = vmatprep.subr.mxu0 0.0
    %1853 = vmatpush2.msra.mxu0 0.0
    %1854 = vmatprep.subr.mxu0 0.0
    %1855 = vmatpush2.msra.mxu0 0.0
    %1856 = vmatprep.subr.mxu0 0.0
    %1857 = vmatpush2.msra.mxu0 0.0
    %1858 = vmatprep.subr.mxu0 0.0
    %1859 = vmatpush2.msra.mxu0 0.0
    %1860 = vmatprep.subr.mxu0 0.0
    %1861 = vmatpush2.msra.mxu0 0.0
    %1862 = vmatprep.subr.mxu0 0.0
    %1863 = vmatpush2.msra.mxu0 0.0
    %1864 = vmatprep.subr.mxu0 0.0
    %1865 = vmatpush2.msra.mxu0 0.0
    %1866 = vmatprep.subr.mxu0 0.0
    %1867 = vmatpush2.msra.mxu0 0.0
    %1868 = vmatprep.subr.mxu0 0.0
    %1869 = vmatpush2.msra.mxu0 0.0
    %1870 = vmatprep.subr.mxu0 0.0
    %1871 = vmatpush2.msra.mxu0 0.0
    %1872 = vmatprep.mubr.f32.mxu0 0.0
    %1873 = vmatmul.mubr.f32.gmra.mxu0 %v1803
    %v1874 = vpop.f32.mrf.mxu0
    %v1875 = vadd.f32 0.0, %v1874
    %v1876 = vpop.f32.mrf.mxu0
    %1877 = vmatprep.mubr.f32.mxu0 0.0
    %1878 = vmatmul.mubr.f32.gmra.mxu0 %v1806
    %v1879 = vpop.f32.mrf.mxu0
    %v1880 = vadd.f32 0.0, %v1879
    %v1881 = vpop.f32.mrf.mxu0
    %1882 = vdwg.mxu0
    %v1883 = vmul.f32 %v1875, 0.5
    %v1884 = vmul.f32 %v1880, 0.5
    %v1885 = vmul.f32 %v1875, 0.044715
    %v1886 = vmul.f32 %v1880, 0.044715
    %v1887 = vmul.f32 %v1885, %v1875
    %v1888 = vmul.f32 %v1886, %v1880
    %v1889 = vmul.f32 %v1887, %v1875
    %v1890 = vmul.f32 %v1888, %v1880
    %v1891 = vadd.f32 %v1875, %v1889
    %v1892 = vadd.f32 %v1880, %v1890
    %v1893 = vmul.f32 %v1891, 0.7978846
    %v1894 = vmul.f32 %v1892, 0.7978846
    %v1895 = vtanh.pop %v1893
    %v1896 = vtanh.pop %v1894
    %v1897 = vadd.f32 %v1895, 1.0
    %v1898 = vadd.f32 %v1896, 1.0
    %v1899 = vmul.f32 %v1883, %v1897
    %v1900 = vmul.f32 %v1884, %v1898
    %v1901 = vld [vmem:[%s8] sm:$0xff]
    %v1902 = vld [vmem:[%s8 + $0x8] sm:$0xff]
    %v1903 = vld [vmem:[%s8 + $0x10] sm:$0xff]
    %v1904 = vld [vmem:[%s8 + $0x18] sm:$0xff]
    %v1905 = vld [vmem:[%s8 + $0x20] sm:$0xff]
    %v1906 = vld [vmem:[%s8 + $0x28] sm:$0xff]
    %v1907 = vld [vmem:[%s8 + $0x30] sm:$0xff]
    %v1908 = vld [vmem:[%s8 + $0x38] sm:$0xff]
    %v1909 = vld [vmem:[%s8 + $0x40] sm:$0xff]
    %v1910 = vld [vmem:[%s8 + $0x48] sm:$0xff]
    %v1911 = vld [vmem:[%s8 + $0x50] sm:$0xff]
    %v1912 = vld [vmem:[%s8 + $0x58] sm:$0xff]
    %v1913 = vld [vmem:[%s8 + $0x60] sm:$0xff]
    %v1914 = vld [vmem:[%s8 + $0x68] sm:$0xff]
    %v1915 = vld [vmem:[%s8 + $0x70] sm:$0xff]
    %v1916 = vld [vmem:[%s8 + $0x78] sm:$0xff]
    %1917 = vmatprep.subr.mxu0 0.0
    %1918 = vmatpush1.msra.mxu0 %v1916
    %1919 = vmatprep.subr.mxu0 0.0
    %1920 = vmatpush1.msra.mxu0 %v1915
    %1921 = vmatprep.subr.mxu0 0.0
    %1922 = vmatpush1.msra.mxu0 %v1914
    %1923 = vmatprep.subr.mxu0 0.0
    %1924 = vmatpush1.msra.mxu0 %v1913
    %1925 = vmatprep.subr.mxu0 0.0
    %1926 = vmatpush1.msra.mxu0 %v1912
    %1927 = vmatprep.subr.mxu0 0.0
    %1928 = vmatpush1.msra.mxu0 %v1911
    %1929 = vmatprep.subr.mxu0 0.0
    %1930 = vmatpush1.msra.mxu0 %v1910
    %1931 = vmatprep.subr.mxu0 0.0
    %1932 = vmatpush1.msra.mxu0 %v1909
    %1933 = vmatprep.subr.mxu0 0.0
    %1934 = vmatpush1.msra.mxu0 %v1908
    %1935 = vmatprep.subr.mxu0 0.0
    %1936 = vmatpush1.msra.mxu0 %v1907
    %1937 = vmatprep.subr.mxu0 0.0
    %1938 = vmatpush1.msra.mxu0 %v1906
    %1939 = vmatprep.subr.mxu0 0.0
    %1940 = vmatpush1.msra.mxu0 %v1905
    %1941 = vmatprep.subr.mxu0 0.0
    %1942 = vmatpush1.msra.mxu0 %v1904
    %1943 = vmatprep.subr.mxu0 0.0
    %1944 = vmatpush1.msra.mxu0 %v1903
    %1945 = vmatprep.subr.mxu0 0.0
    %1946 = vmatpush1.msra.mxu0 %v1902
    %1947 = vmatprep.subr.mxu0 0.0
    %1948 = vmatpush1.msra.mxu0 %v1901
    %1949 = vmatprep.subr.mxu0 0.0
    %1950 = vmatpush2.msra.mxu0 0.0
    %1951 = vmatprep.subr.mxu0 0.0
    %1952 = vmatpush2.msra.mxu0 0.0
    %1953 = vmatprep.subr.mxu0 0.0
    %1954 = vmatpush2.msra.mxu0 0.0
    %1955 = vmatprep.subr.mxu0 0.0
    %1956 = vmatpush2.msra.mxu0 0.0
    %1957 = vmatprep.subr.mxu0 0.0
    %1958 = vmatpush2.msra.mxu0 0.0
    %1959 = vmatprep.subr.mxu0 0.0
    %1960 = vmatpush2.msra.mxu0 0.0
    %1961 = vmatprep.subr.mxu0 0.0
    %1962 = vmatpush2.msra.mxu0 0.0
    %1963 = vmatprep.subr.mxu0 0.0
    %1964 = vmatpush2.msra.mxu0 0.0
    %1965 = vmatprep.subr.mxu0 0.0
    %1966 = vmatpush2.msra.mxu0 0.0
    %1967 = vmatprep.subr.mxu0 0.0
    %1968 = vmatpush2.msra.mxu0 0.0
    %1969 = vmatprep.subr.mxu0 0.0
    %1970 = vmatpush2.msra.mxu0 0.0
    %1971 = vmatprep.subr.mxu0 0.0
    %1972 = vmatpush2.msra.mxu0 0.0
    %1973 = vmatprep.subr.mxu0 0.0
    %1974 = vmatpush2.msra.mxu0 0.0
    %1975 = vmatprep.subr.mxu0 0.0
    %1976 = vmatpush2.msra.mxu0 0.0
    %1977 = vmatprep.subr.mxu0 0.0
    %1978 = vmatpush2.msra.mxu0 0.0
    %1979 = vmatprep.subr.mxu0 0.0
    %1980 = vmatpush2.msra.mxu0 0.0
    %1981 = vmatprep.mubr.f32.mxu0 0.0
    %1982 = vmatmul.mubr.f32.gmra.mxu0 %v1899
    %v1983 = vpop.f32.mrf.mxu0
    %v1984 = vadd.f32 0.0, %v1983
    %v1985 = vpop.f32.mrf.mxu0
    %1986 = vmatprep.mubr.f32.mxu0 0.0
    %1987 = vmatmul.mubr.f32.gmra.mxu0 %v1900
    %v1988 = vpop.f32.mrf.mxu0
    %v1989 = vadd.f32 0.0, %v1988
    %v1990 = vpop.f32.mrf.mxu0
    %1991 = vdwg.mxu0
    %v1992 = vadd.f32 %v1762, %v1984
    %v1993 = vadd.f32 %v1763, %v1989
    %1994 = vst.msk [vmem:[#allocation5] sm:$0xff] %vm51, %v1992
    %1995 = vst.msk [vmem:[#allocation5 + $0x8] sm:$0xff] %vm51, %v1993
    // Predicated region
    $region42: #{tpu_custom_call.1} parent=1 // pred_check
      _
    $region43: #{tpu_custom_call.1} parent=1 // pred_check_branch
      %1997 = sbr.rel (0) target = $region45
    $region44: #{tpu_custom_call.1} parent=1 // pred_region
      %s1999 = ssub.s32 256, 256
      %2000 = vsyncadd [#allocation4], %s1999
      %s2001 = sshll.u32 [#allocation5], 4
      %s2002 = int_to_ptr.vmem [resolvable:$true] %s2001
      %2007 = dma.vmem_to_hbm [thread:$0]  %s2002, 256, %s9, [#allocation4], 128, 128, 8
    $region45: #{tpu_custom_call.1} parent=1 // pred_fallthru
      _
    // Predicated region
    $region46: #{tpu_custom_call.1} parent=1 // pred_check
      _
    $region47: #{tpu_custom_call.1} parent=1 // pred_check_branch
      %2009 = sbr.rel (0) target = $region49
    $region48: #{tpu_custom_call.1} parent=1 // pred_region
      %2010 = dma.done [#allocation4], 256
    $region49: #{tpu_custom_call.1} parent=1 // pred_fallthru
      _
    %2011 = vsyncpa [#allocation3], 1
    %2012 = vsyncpa [#allocation4], 1

</llo_original>
